<compile_context>
chip_gen: v5e
topology: v5e:2x2
jax: 0.10.0
libtpu: 0.0.40
codegen_flags: <defaults>
</compile_context>

<pallas_src>
import functools

import jax
import jax.numpy as jnp
from jax import lax
from jax.experimental import pallas as pl
from jax.experimental.pallas import tpu as pltpu


def _rnn_chunk_kernel(o_pad, tt, x_ref, h0_ref, wx_ref, wh_ref, b_ref,
                      out_ref, hT_ref):
    """Runs `tt` recurrence steps per grid iteration.

    hT_ref (constant index_map -> VMEM-resident across the sequential grid) doubles as
    the hidden carry between chunks; x_ref/out_ref hold one (tt, B, .) time chunk.
    """
    @pl.when(pl.program_id(0) == 0)
    def _():
        hT_ref[...] = h0_ref[...]                           # init hidden carry (f32)

    def step(t, h):
        x = x_ref[t]                                        # (B, I) bf16 (pre-cast)
        # Fused [i2o | i2h] matmul on the MXU, f32 accumulation, shared LHS.
        z = (jnp.dot(x, wx_ref[...], preferred_element_type=jnp.float32)
             + jnp.dot(h.astype(wh_ref.dtype), wh_ref[...],
                       preferred_element_type=jnp.float32)
             + b_ref[...])                                  # (B, o_pad + H) f32

        # Hidden update FIRST: it is the only value on the cross-step critical path.
        new_h = z[:, o_pad:]                                # (B, H) f32

        # Log-softmax (off the carry path; overlaps with the next step's matmuls).
        logits = z[:, :o_pad]                               # pad cols carry bias=-1e30
        m = jnp.max(logits, axis=-1, keepdims=True)
        shifted = logits - m
        lse = jnp.log(jnp.sum(jnp.exp(shifted), axis=-1, keepdims=True))
        out_ref[t] = shifted - lse                          # lane-dense (B, o_pad) store
        return new_h

    hT_ref[...] = lax.fori_loop(0, tt, step, hT_ref[...], unroll=True)


def _pick_time_chunk(T, max_chunk=32):
    """Largest chunk <= max_chunk that divides T (keeps VMEM use bounded for long T)."""
    tt = min(T, max_chunk)
    while T % tt != 0:
        tt -= 1
    return tt


def rnn_sequence_forward(x_seq, h0, fused_params):
    """Run the RNN cell over a (T, B, I) sequence inside ONE pallas_call.

    Returns (log_probs_padded (T, B, O_pad) f32, final_hidden (B, H) f32).
    """
    wx, wh, b = fused_params
    T, B, I = x_seq.shape
    H = wh.shape[0]
    n_out = wx.shape[1]
    o_pad = n_out - H
    tt = _pick_time_chunk(T)

    x_bf = x_seq.astype(wx.dtype)                           # halve input DMA bytes
    b_bcast = jnp.broadcast_to(b.reshape(1, n_out), (B, n_out))  # plain VALU add

    kernel = functools.partial(_rnn_chunk_kernel, o_pad, tt)
    out_pad, hT = pl.pallas_call(
        kernel,
        out_shape=(jax.ShapeDtypeStruct((T, B, o_pad), jnp.float32),
                   jax.ShapeDtypeStruct((B, H), jnp.float32)),
        grid_spec=pltpu.PrefetchScalarGridSpec(
            num_scalar_prefetch=0,
            grid=(T // tt,),
            in_specs=[
                pl.BlockSpec((tt, B, I), lambda c: (c, 0, 0)),  # per-chunk input (bf16)
                pl.BlockSpec((B, H), lambda c: (0, 0)),         # h0 (resident)
                pl.BlockSpec((I, n_out), lambda c: (0, 0)),     # Wx (resident, bf16)
                pl.BlockSpec((H, n_out), lambda c: (0, 0)),     # Wh (resident, bf16)
                pl.BlockSpec((B, n_out), lambda c: (0, 0)),     # bias, pre-broadcast f32
            ],
            out_specs=(
                pl.BlockSpec((tt, B, o_pad), lambda c: (c, 0, 0)),  # per-chunk log-probs
                pl.BlockSpec((B, H), lambda c: (0, 0)),             # hidden carry / final
            ),
        ),
        compiler_params=pltpu.CompilerParams(
            dimension_semantics=("arbitrary",)),                    # time is sequential
    )(x_bf, h0, wx, wh, b_bcast)
    return out_pad, hT


def rnn_forward(input_tensor, hidden_tensor, fused_params, output_size):
    """Pallas equivalent of RNN.forward (single step). Returns (log_probs, new_hidden)."""
    out_pad, hT = rnn_sequence_forward(input_tensor[None], hidden_tensor, fused_params)
    return out_pad[0, :, :output_size], hT


def init_params(key, input_size, hidden_size, output_size):
    """nn.Linear-style init (uniform +-1/sqrt(fan_in)); returns (fused bf16, raw f32)."""
    fan_in = input_size + hidden_size
    o_pad = ((output_size + 127) // 128) * 128             # lane-dense output width
    bound = 1.0 / jnp.sqrt(jnp.float32(fan_in))
    k1, k2, k3, k4 = jax.random.split(key, 4)
    # stored pre-transposed: (fan_in, out_features)
    w_o = jax.random.uniform(k1, (fan_in, output_size), jnp.float32, -bound, bound)
    b_o = jax.random.uniform(k2, (output_size,), jnp.float32, -bound, bound)
    w_h = jax.random.uniform(k3, (fan_in, hidden_size), jnp.float32, -bound, bound)
    b_h = jax.random.uniform(k4, (hidden_size,), jnp.float32, -bound, bound)

    # Fuse columns [i2o (padded to o_pad) | i2h]; padded weight cols are 0, padded
    # bias cols are -1e30 so the softmax ignores them.
    w_o_pad = jnp.zeros((fan_in, o_pad), jnp.float32).at[:, :output_size].set(w_o)
    b_o_pad = jnp.full((o_pad,), -1e30, jnp.float32).at[:output_size].set(b_o)
    w_full = jnp.concatenate([w_o_pad, w_h], axis=1)        # (fan_in, o_pad + H)
    b_full = jnp.concatenate([b_o_pad, b_h])[None, :]       # (1,      o_pad + H) f32

    wx = w_full[:input_size].astype(jnp.bfloat16)           # (I, o_pad + H)
    wh = w_full[input_size:].astype(jnp.bfloat16)           # (H, o_pad + H)
    return (wx, wh, b_full), (w_o, b_o, w_h, b_h)


if __name__ == "__main__":
    input_size, hidden_size, output_size = 64, 128, 32
    batch, seq_len = 8, 8

    key = jax.random.PRNGKey(0)
    kp, kx = jax.random.split(key)
    fused_params, raw_params = init_params(kp, input_size, hidden_size, output_size)

    x_seq = jax.random.normal(kx, (seq_len, batch, input_size), jnp.float32)
    h0 = jnp.zeros((batch, hidden_size), jnp.float32)       # RNN.init_hidden, batched

    # Full-sequence kernel (whole time loop inside one pallas_call / one grid chunk).
    out_pad, hT = jax.jit(rnn_sequence_forward)(x_seq, h0, fused_params)
    jax.block_until_ready((out_pad, hT))
    out = out_pad[:, :, :output_size]                       # drop lane padding

    # Single-step wrapper (matches the module's forward signature).
    step_fn = jax.jit(functools.partial(rnn_forward, output_size=output_size))
    out0, h1 = step_fn(x_seq[0], h0, fused_params)
    jax.block_until_ready((out0, h1))

    # Pure-JAX reference with identical dtype handling (bf16 weights/inputs, f32 accum).
    w_o, b_o, w_h, b_h = raw_params
    w_o_bf = w_o.astype(jnp.bfloat16)
    w_h_bf = w_h.astype(jnp.bfloat16)
    h = h0
    ref_outs, ref_hs = [], []
    for t in range(seq_len):
        combined = jnp.concatenate([x_seq[t], h], axis=1).astype(jnp.bfloat16)
        logits = jnp.dot(combined, w_o_bf, preferred_element_type=jnp.float32) + b_o
        ref_outs.append(jax.nn.log_softmax(logits, axis=1))
        h = jnp.dot(combined, w_h_bf, preferred_element_type=jnp.float32) + b_h
        ref_hs.append(h)
    out_ref = jnp.stack(ref_outs)

    assert jnp.allclose(out, out_ref, atol=1e-3, rtol=1e-3), "sequence output mismatch"
    assert jnp.allclose(hT, ref_hs[-1], atol=1e-3, rtol=1e-3), "final hidden mismatch"
    assert jnp.allclose(out0, out_ref[0], atol=1e-3, rtol=1e-3), "step output mismatch"
    assert jnp.allclose(h1, ref_hs[0], atol=1e-3, rtol=1e-3), "step hidden mismatch"

    print("KERNEL_OK")
</pallas_src>

<mosaic_0001>
module attributes {stable_mosaic.version = 11 : i64} {
  func.func @_rnn_chunk_kernel(%arg0: i32, %arg1: memref<8x8x64xbf16, #tpu.memory_space<vmem>>, %arg2: memref<8x128xf32, #tpu.memory_space<vmem>>, %arg3: memref<64x256xbf16, #tpu.memory_space<vmem>>, %arg4: memref<128x256xbf16, #tpu.memory_space<vmem>>, %arg5: memref<8x256xf32, #tpu.memory_space<vmem>>, %arg6: memref<8x8x128xf32, #tpu.memory_space<vmem>>, %arg7: memref<8x128xf32, #tpu.memory_space<vmem>>) attributes {dimension_semantics = [#tpu.dimension_semantics<arbitrary>], iteration_bounds = array<i64: 1>, scalar_prefetch = 0 : i64, scratch_operands = 0 : i64, tpu.core_type = #tpu.core_type<tc>, window_params = [{transform_indices = @transform_0, window_bounds = array<i64: 8, 8, 64>}, {pipeline_mode = #tpu.pipeline_mode<synchronous>, transform_indices = @transform_1, window_bounds = array<i64: 8, 128>}, {pipeline_mode = #tpu.pipeline_mode<synchronous>, transform_indices = @transform_2, window_bounds = array<i64: 64, 256>}, {pipeline_mode = #tpu.pipeline_mode<synchronous>, transform_indices = @transform_3, window_bounds = array<i64: 128, 256>}, {pipeline_mode = #tpu.pipeline_mode<synchronous>, transform_indices = @transform_4, window_bounds = array<i64: 8, 256>}, {transform_indices = @transform_5, window_bounds = array<i64: 8, 8, 128>}, {pipeline_mode = #tpu.pipeline_mode<synchronous>, transform_indices = @transform_6, window_bounds = array<i64: 8, 128>}]} {
    %c0_i32 = arith.constant 0 : i32
    %0 = arith.cmpi eq, %arg0, %c0_i32 : i32
    %1 = arith.extui %0 : i1 to i32
    %c0_i32_0 = arith.constant 0 : i32
    %2 = arith.cmpi ne, %1, %c0_i32_0 : i32
    scf.if %2 {
      %c0_116 = arith.constant 0 : index
      %c0_117 = arith.constant 0 : index
      %221 = vector.load %arg2[%c0_116, %c0_117] : memref<8x128xf32, #tpu.memory_space<vmem>>, vector<8x128xf32>
      %c0_118 = arith.constant 0 : index
      %c0_119 = arith.constant 0 : index
      %222 = vector.load %arg7[%c0_118, %c0_119] : memref<8x128xf32, #tpu.memory_space<vmem>>, vector<8x128xf32>
      tpu.vector_store %arg7[%c0_118, %c0_119], %221 {strides = array<i32>} : memref<8x128xf32, #tpu.memory_space<vmem>>, vector<8x128xf32>,
    } else {
    }
    %c0 = arith.constant 0 : index
    %c0_1 = arith.constant 0 : index
    %3 = vector.load %arg7[%c0, %c0_1] : memref<8x128xf32, #tpu.memory_space<vmem>>, vector<8x128xf32>
    %c0_i32_2 = arith.constant 0 : i32
    %4 = arith.index_cast %c0_i32_2 : i32 to index
    %c0_3 = arith.constant 0 : index
    %c0_4 = arith.constant 0 : index
    %5 = vector.load %arg1[%4, %c0_3, %c0_4] : memref<8x8x64xbf16, #tpu.memory_space<vmem>>, vector<1x8x64xbf16>
    %6 = vector.shape_cast %5 : vector<1x8x64xbf16> to vector<8x64xbf16>
    %c0_5 = arith.constant 0 : index
    %c0_6 = arith.constant 0 : index
    %7 = vector.load %arg3[%c0_5, %c0_6] : memref<64x256xbf16, #tpu.memory_space<vmem>>, vector<64x256xbf16>
    %cst = arith.constant dense<0.000000e+00> : vector<8x256xf32>
    %8 = tpu.matmul %6, %7, %cst {dimension_numbers = #tpu.dot_dimension_numbers<[1], [0], [0], [1], [0, 0, 1, 1], [], []>} : vector<8x64xbf16>, vector<64x256xbf16>, vector<8x256xf32> -> vector<8x256xf32>
    %9 = arith.truncf %3 : vector<8x128xf32> to vector<8x128xbf16>
    %c0_7 = arith.constant 0 : index
    %c0_8 = arith.constant 0 : index
    %10 = vector.load %arg4[%c0_7, %c0_8] : memref<128x256xbf16, #tpu.memory_space<vmem>>, vector<128x256xbf16>
    %cst_9 = arith.constant dense<0.000000e+00> : vector<8x256xf32>
    %11 = tpu.matmul %9, %10, %cst_9 {dimension_numbers = #tpu.dot_dimension_numbers<[1], [0], [0], [1], [0, 0, 1, 1], [], []>} : vector<8x128xbf16>, vector<128x256xbf16>, vector<8x256xf32> -> vector<8x256xf32>
    %12 = arith.addf %8, %11 : vector<8x256xf32>
    %c0_10 = arith.constant 0 : index
    %c0_11 = arith.constant 0 : index
    %13 = vector.load %arg5[%c0_10, %c0_11] : memref<8x256xf32, #tpu.memory_space<vmem>>, vector<8x256xf32>
    %14 = arith.addf %12, %13 : vector<8x256xf32>
    %15 = vector.extract_strided_slice %14 {offsets = [0, 128], sizes = [8, 128], strides = [1, 1]} : vector<8x256xf32> to vector<8x128xf32>
    %16 = vector.extract_strided_slice %14 {offsets = [0, 0], sizes = [8, 128], strides = [1, 1]} : vector<8x256xf32> to vector<8x128xf32>
    %cst_12 = arith.constant dense<0xFF800000> : vector<8xf32>
    %17 = vector.multi_reduction <maximumf>, %16, %cst_12 [1] : vector<8x128xf32> to vector<8xf32>
    %18 = vector.shape_cast %17 : vector<8xf32> to vector<8x1xf32>
    %19 = vector.broadcast %18 : vector<8x1xf32> to vector<8x128xf32>
    %20 = arith.subf %16, %19 : vector<8x128xf32>
    %21 = math.exp %20 : vector<8x128xf32>
    %cst_13 = arith.constant dense<0.000000e+00> : vector<8xf32>
    %22 = vector.multi_reduction <add>, %21, %cst_13 [1] : vector<8x128xf32> to vector<8xf32>
    %23 = vector.shape_cast %22 : vector<8xf32> to vector<8x1xf32>
    %24 = math.log %23 : vector<8x1xf32>
    %25 = vector.broadcast %24 : vector<8x1xf32> to vector<8x128xf32>
    %26 = arith.subf %20, %25 : vector<8x128xf32>
    %27 = arith.index_cast %c0_i32_2 : i32 to index
    %c0_14 = arith.constant 0 : index
    %c0_15 = arith.constant 0 : index
    %28 = vector.load %arg6[%27, %c0_14, %c0_15] : memref<8x8x128xf32, #tpu.memory_space<vmem>>, vector<1x8x128xf32>
    %29 = vector.shape_cast %28 : vector<1x8x128xf32> to vector<8x128xf32>
    %30 = vector.shape_cast %26 : vector<8x128xf32> to vector<1x8x128xf32>
    tpu.vector_store %arg6[%27, %c0_14, %c0_15], %30 {strides = array<i32>} : memref<8x8x128xf32, #tpu.memory_space<vmem>>, vector<1x8x128xf32>,
    %c1_i32 = arith.constant 1 : i32
    %31 = arith.index_cast %c1_i32 : i32 to index
    %c0_16 = arith.constant 0 : index
    %c0_17 = arith.constant 0 : index
    %32 = vector.load %arg1[%31, %c0_16, %c0_17] : memref<8x8x64xbf16, #tpu.memory_space<vmem>>, vector<1x8x64xbf16>
    %33 = vector.shape_cast %32 : vector<1x8x64xbf16> to vector<8x64xbf16>
    %c0_18 = arith.constant 0 : index
    %c0_19 = arith.constant 0 : index
    %34 = vector.load %arg3[%c0_18, %c0_19] : memref<64x256xbf16, #tpu.memory_space<vmem>>, vector<64x256xbf16>
    %cst_20 = arith.constant dense<0.000000e+00> : vector<8x256xf32>
    %35 = tpu.matmul %33, %34, %cst_20 {dimension_numbers = #tpu.dot_dimension_numbers<[1], [0], [0], [1], [0, 0, 1, 1], [], []>} : vector<8x64xbf16>, vector<64x256xbf16>, vector<8x256xf32> -> vector<8x256xf32>
    %36 = arith.truncf %15 : vector<8x128xf32> to vector<8x128xbf16>
    %c0_21 = arith.constant 0 : index
    %c0_22 = arith.constant 0 : index
    %37 = vector.load %arg4[%c0_21, %c0_22] : memref<128x256xbf16, #tpu.memory_space<vmem>>, vector<128x256xbf16>
    %cst_23 = arith.constant dense<0.000000e+00> : vector<8x256xf32>
    %38 = tpu.matmul %36, %37, %cst_23 {dimension_numbers = #tpu.dot_dimension_numbers<[1], [0], [0], [1], [0, 0, 1, 1], [], []>} : vector<8x128xbf16>, vector<128x256xbf16>, vector<8x256xf32> -> vector<8x256xf32>
    %39 = arith.addf %35, %38 : vector<8x256xf32>
    %c0_24 = arith.constant 0 : index
    %c0_25 = arith.constant 0 : index
    %40 = vector.load %arg5[%c0_24, %c0_25] : memref<8x256xf32, #tpu.memory_space<vmem>>, vector<8x256xf32>
    %41 = arith.addf %39, %40 : vector<8x256xf32>
    %42 = vector.extract_strided_slice %41 {offsets = [0, 128], sizes = [8, 128], strides = [1, 1]} : vector<8x256xf32> to vector<8x128xf32>
    %43 = vector.extract_strided_slice %41 {offsets = [0, 0], sizes = [8, 128], strides = [1, 1]} : vector<8x256xf32> to vector<8x128xf32>
    %cst_26 = arith.constant dense<0xFF800000> : vector<8xf32>
    %44 = vector.multi_reduction <maximumf>, %43, %cst_26 [1] : vector<8x128xf32> to vector<8xf32>
    %45 = vector.shape_cast %44 : vector<8xf32> to vector<8x1xf32>
    %46 = vector.broadcast %45 : vector<8x1xf32> to vector<8x128xf32>
    %47 = arith.subf %43, %46 : vector<8x128xf32>
    %48 = math.exp %47 : vector<8x128xf32>
    %cst_27 = arith.constant dense<0.000000e+00> : vector<8xf32>
    %49 = vector.multi_reduction <add>, %48, %cst_27 [1] : vector<8x128xf32> to vector<8xf32>
    %50 = vector.shape_cast %49 : vector<8xf32> to vector<8x1xf32>
    %51 = math.log %50 : vector<8x1xf32>
    %52 = vector.broadcast %51 : vector<8x1xf32> to vector<8x128xf32>
    %53 = arith.subf %47, %52 : vector<8x128xf32>
    %54 = arith.index_cast %c1_i32 : i32 to index
    %c0_28 = arith.constant 0 : index
    %c0_29 = arith.constant 0 : index
    %55 = vector.load %arg6[%54, %c0_28, %c0_29] : memref<8x8x128xf32, #tpu.memory_space<vmem>>, vector<1x8x128xf32>
    %56 = vector.shape_cast %55 : vector<1x8x128xf32> to vector<8x128xf32>
    %57 = vector.shape_cast %53 : vector<8x128xf32> to vector<1x8x128xf32>
    tpu.vector_store %arg6[%54, %c0_28, %c0_29], %57 {strides = array<i32>} : memref<8x8x128xf32, #tpu.memory_space<vmem>>, vector<1x8x128xf32>,
    %c2_i32 = arith.constant 2 : i32
    %58 = arith.index_cast %c2_i32 : i32 to index
    %c0_30 = arith.constant 0 : index
    %c0_31 = arith.constant 0 : index
    %59 = vector.load %arg1[%58, %c0_30, %c0_31] : memref<8x8x64xbf16, #tpu.memory_space<vmem>>, vector<1x8x64xbf16>
    %60 = vector.shape_cast %59 : vector<1x8x64xbf16> to vector<8x64xbf16>
    %c0_32 = arith.constant 0 : index
    %c0_33 = arith.constant 0 : index
    %61 = vector.load %arg3[%c0_32, %c0_33] : memref<64x256xbf16, #tpu.memory_space<vmem>>, vector<64x256xbf16>
    %cst_34 = arith.constant dense<0.000000e+00> : vector<8x256xf32>
    %62 = tpu.matmul %60, %61, %cst_34 {dimension_numbers = #tpu.dot_dimension_numbers<[1], [0], [0], [1], [0, 0, 1, 1], [], []>} : vector<8x64xbf16>, vector<64x256xbf16>, vector<8x256xf32> -> vector<8x256xf32>
    %63 = arith.truncf %42 : vector<8x128xf32> to vector<8x128xbf16>
    %c0_35 = arith.constant 0 : index
    %c0_36 = arith.constant 0 : index
    %64 = vector.load %arg4[%c0_35, %c0_36] : memref<128x256xbf16, #tpu.memory_space<vmem>>, vector<128x256xbf16>
    %cst_37 = arith.constant dense<0.000000e+00> : vector<8x256xf32>
    %65 = tpu.matmul %63, %64, %cst_37 {dimension_numbers = #tpu.dot_dimension_numbers<[1], [0], [0], [1], [0, 0, 1, 1], [], []>} : vector<8x128xbf16>, vector<128x256xbf16>, vector<8x256xf32> -> vector<8x256xf32>
    %66 = arith.addf %62, %65 : vector<8x256xf32>
    %c0_38 = arith.constant 0 : index
    %c0_39 = arith.constant 0 : index
    %67 = vector.load %arg5[%c0_38, %c0_39] : memref<8x256xf32, #tpu.memory_space<vmem>>, vector<8x256xf32>
    %68 = arith.addf %66, %67 : vector<8x256xf32>
    %69 = vector.extract_strided_slice %68 {offsets = [0, 128], sizes = [8, 128], strides = [1, 1]} : vector<8x256xf32> to vector<8x128xf32>
    %70 = vector.extract_strided_slice %68 {offsets = [0, 0], sizes = [8, 128], strides = [1, 1]} : vector<8x256xf32> to vector<8x128xf32>
    %cst_40 = arith.constant dense<0xFF800000> : vector<8xf32>
    %71 = vector.multi_reduction <maximumf>, %70, %cst_40 [1] : vector<8x128xf32> to vector<8xf32>
    %72 = vector.shape_cast %71 : vector<8xf32> to vector<8x1xf32>
    %73 = vector.broadcast %72 : vector<8x1xf32> to vector<8x128xf32>
    %74 = arith.subf %70, %73 : vector<8x128xf32>
    %75 = math.exp %74 : vector<8x128xf32>
    %cst_41 = arith.constant dense<0.000000e+00> : vector<8xf32>
    %76 = vector.multi_reduction <add>, %75, %cst_41 [1] : vector<8x128xf32> to vector<8xf32>
    %77 = vector.shape_cast %76 : vector<8xf32> to vector<8x1xf32>
    %78 = math.log %77 : vector<8x1xf32>
    %79 = vector.broadcast %78 : vector<8x1xf32> to vector<8x128xf32>
    %80 = arith.subf %74, %79 : vector<8x128xf32>
    %81 = arith.index_cast %c2_i32 : i32 to index
    %c0_42 = arith.constant 0 : index
    %c0_43 = arith.constant 0 : index
    %82 = vector.load %arg6[%81, %c0_42, %c0_43] : memref<8x8x128xf32, #tpu.memory_space<vmem>>, vector<1x8x128xf32>
    %83 = vector.shape_cast %82 : vector<1x8x128xf32> to vector<8x128xf32>
    %84 = vector.shape_cast %80 : vector<8x128xf32> to vector<1x8x128xf32>
    tpu.vector_store %arg6[%81, %c0_42, %c0_43], %84 {strides = array<i32>} : memref<8x8x128xf32, #tpu.memory_space<vmem>>, vector<1x8x128xf32>,
    %c3_i32 = arith.constant 3 : i32
    %85 = arith.index_cast %c3_i32 : i32 to index
    %c0_44 = arith.constant 0 : index
    %c0_45 = arith.constant 0 : index
    %86 = vector.load %arg1[%85, %c0_44, %c0_45] : memref<8x8x64xbf16, #tpu.memory_space<vmem>>, vector<1x8x64xbf16>
    %87 = vector.shape_cast %86 : vector<1x8x64xbf16> to vector<8x64xbf16>
    %c0_46 = arith.constant 0 : index
    %c0_47 = arith.constant 0 : index
    %88 = vector.load %arg3[%c0_46, %c0_47] : memref<64x256xbf16, #tpu.memory_space<vmem>>, vector<64x256xbf16>
    %cst_48 = arith.constant dense<0.000000e+00> : vector<8x256xf32>
    %89 = tpu.matmul %87, %88, %cst_48 {dimension_numbers = #tpu.dot_dimension_numbers<[1], [0], [0], [1], [0, 0, 1, 1], [], []>} : vector<8x64xbf16>, vector<64x256xbf16>, vector<8x256xf32> -> vector<8x256xf32>
    %90 = arith.truncf %69 : vector<8x128xf32> to vector<8x128xbf16>
    %c0_49 = arith.constant 0 : index
    %c0_50 = arith.constant 0 : index
    %91 = vector.load %arg4[%c0_49, %c0_50] : memref<128x256xbf16, #tpu.memory_space<vmem>>, vector<128x256xbf16>
    %cst_51 = arith.constant dense<0.000000e+00> : vector<8x256xf32>
    %92 = tpu.matmul %90, %91, %cst_51 {dimension_numbers = #tpu.dot_dimension_numbers<[1], [0], [0], [1], [0, 0, 1, 1], [], []>} : vector<8x128xbf16>, vector<128x256xbf16>, vector<8x256xf32> -> vector<8x256xf32>
    %93 = arith.addf %89, %92 : vector<8x256xf32>
    %c0_52 = arith.constant 0 : index
    %c0_53 = arith.constant 0 : index
    %94 = vector.load %arg5[%c0_52, %c0_53] : memref<8x256xf32, #tpu.memory_space<vmem>>, vector<8x256xf32>
    %95 = arith.addf %93, %94 : vector<8x256xf32>
    %96 = vector.extract_strided_slice %95 {offsets = [0, 128], sizes = [8, 128], strides = [1, 1]} : vector<8x256xf32> to vector<8x128xf32>
    %97 = vector.extract_strided_slice %95 {offsets = [0, 0], sizes = [8, 128], strides = [1, 1]} : vector<8x256xf32> to vector<8x128xf32>
    %cst_54 = arith.constant dense<0xFF800000> : vector<8xf32>
    %98 = vector.multi_reduction <maximumf>, %97, %cst_54 [1] : vector<8x128xf32> to vector<8xf32>
    %99 = vector.shape_cast %98 : vector<8xf32> to vector<8x1xf32>
    %100 = vector.broadcast %99 : vector<8x1xf32> to vector<8x128xf32>
    %101 = arith.subf %97, %100 : vector<8x128xf32>
    %102 = math.exp %101 : vector<8x128xf32>
    %cst_55 = arith.constant dense<0.000000e+00> : vector<8xf32>
    %103 = vector.multi_reduction <add>, %102, %cst_55 [1] : vector<8x128xf32> to vector<8xf32>
    %104 = vector.shape_cast %103 : vector<8xf32> to vector<8x1xf32>
    %105 = math.log %104 : vector<8x1xf32>
    %106 = vector.broadcast %105 : vector<8x1xf32> to vector<8x128xf32>
    %107 = arith.subf %101, %106 : vector<8x128xf32>
    %108 = arith.index_cast %c3_i32 : i32 to index
    %c0_56 = arith.constant 0 : index
    %c0_57 = arith.constant 0 : index
    %109 = vector.load %arg6[%108, %c0_56, %c0_57] : memref<8x8x128xf32, #tpu.memory_space<vmem>>, vector<1x8x128xf32>
    %110 = vector.shape_cast %109 : vector<1x8x128xf32> to vector<8x128xf32>
    %111 = vector.shape_cast %107 : vector<8x128xf32> to vector<1x8x128xf32>
    tpu.vector_store %arg6[%108, %c0_56, %c0_57], %111 {strides = array<i32>} : memref<8x8x128xf32, #tpu.memory_space<vmem>>, vector<1x8x128xf32>,
    %c4_i32 = arith.constant 4 : i32
    %112 = arith.index_cast %c4_i32 : i32 to index
    %c0_58 = arith.constant 0 : index
    %c0_59 = arith.constant 0 : index
    %113 = vector.load %arg1[%112, %c0_58, %c0_59] : memref<8x8x64xbf16, #tpu.memory_space<vmem>>, vector<1x8x64xbf16>
    %114 = vector.shape_cast %113 : vector<1x8x64xbf16> to vector<8x64xbf16>
    %c0_60 = arith.constant 0 : index
    %c0_61 = arith.constant 0 : index
    %115 = vector.load %arg3[%c0_60, %c0_61] : memref<64x256xbf16, #tpu.memory_space<vmem>>, vector<64x256xbf16>
    %cst_62 = arith.constant dense<0.000000e+00> : vector<8x256xf32>
    %116 = tpu.matmul %114, %115, %cst_62 {dimension_numbers = #tpu.dot_dimension_numbers<[1], [0], [0], [1], [0, 0, 1, 1], [], []>} : vector<8x64xbf16>, vector<64x256xbf16>, vector<8x256xf32> -> vector<8x256xf32>
    %117 = arith.truncf %96 : vector<8x128xf32> to vector<8x128xbf16>
    %c0_63 = arith.constant 0 : index
    %c0_64 = arith.constant 0 : index
    %118 = vector.load %arg4[%c0_63, %c0_64] : memref<128x256xbf16, #tpu.memory_space<vmem>>, vector<128x256xbf16>
    %cst_65 = arith.constant dense<0.000000e+00> : vector<8x256xf32>
    %119 = tpu.matmul %117, %118, %cst_65 {dimension_numbers = #tpu.dot_dimension_numbers<[1], [0], [0], [1], [0, 0, 1, 1], [], []>} : vector<8x128xbf16>, vector<128x256xbf16>, vector<8x256xf32> -> vector<8x256xf32>
    %120 = arith.addf %116, %119 : vector<8x256xf32>
    %c0_66 = arith.constant 0 : index
    %c0_67 = arith.constant 0 : index
    %121 = vector.load %arg5[%c0_66, %c0_67] : memref<8x256xf32, #tpu.memory_space<vmem>>, vector<8x256xf32>
    %122 = arith.addf %120, %121 : vector<8x256xf32>
    %123 = vector.extract_strided_slice %122 {offsets = [0, 128], sizes = [8, 128], strides = [1, 1]} : vector<8x256xf32> to vector<8x128xf32>
    %124 = vector.extract_strided_slice %122 {offsets = [0, 0], sizes = [8, 128], strides = [1, 1]} : vector<8x256xf32> to vector<8x128xf32>
    %cst_68 = arith.constant dense<0xFF800000> : vector<8xf32>
    %125 = vector.multi_reduction <maximumf>, %124, %cst_68 [1] : vector<8x128xf32> to vector<8xf32>
    %126 = vector.shape_cast %125 : vector<8xf32> to vector<8x1xf32>
    %127 = vector.broadcast %126 : vector<8x1xf32> to vector<8x128xf32>
    %128 = arith.subf %124, %127 : vector<8x128xf32>
    %129 = math.exp %128 : vector<8x128xf32>
    %cst_69 = arith.constant dense<0.000000e+00> : vector<8xf32>
    %130 = vector.multi_reduction <add>, %129, %cst_69 [1] : vector<8x128xf32> to vector<8xf32>
    %131 = vector.shape_cast %130 : vector<8xf32> to vector<8x1xf32>
    %132 = math.log %131 : vector<8x1xf32>
    %133 = vector.broadcast %132 : vector<8x1xf32> to vector<8x128xf32>
    %134 = arith.subf %128, %133 : vector<8x128xf32>
    %135 = arith.index_cast %c4_i32 : i32 to index
    %c0_70 = arith.constant 0 : index
    %c0_71 = arith.constant 0 : index
    %136 = vector.load %arg6[%135, %c0_70, %c0_71] : memref<8x8x128xf32, #tpu.memory_space<vmem>>, vector<1x8x128xf32>
    %137 = vector.shape_cast %136 : vector<1x8x128xf32> to vector<8x128xf32>
    %138 = vector.shape_cast %134 : vector<8x128xf32> to vector<1x8x128xf32>
    tpu.vector_store %arg6[%135, %c0_70, %c0_71], %138 {strides = array<i32>} : memref<8x8x128xf32, #tpu.memory_space<vmem>>, vector<1x8x128xf32>,
    %c5_i32 = arith.constant 5 : i32
    %139 = arith.index_cast %c5_i32 : i32 to index
    %c0_72 = arith.constant 0 : index
    %c0_73 = arith.constant 0 : index
    %140 = vector.load %arg1[%139, %c0_72, %c0_73] : memref<8x8x64xbf16, #tpu.memory_space<vmem>>, vector<1x8x64xbf16>
    %141 = vector.shape_cast %140 : vector<1x8x64xbf16> to vector<8x64xbf16>
    %c0_74 = arith.constant 0 : index
    %c0_75 = arith.constant 0 : index
    %142 = vector.load %arg3[%c0_74, %c0_75] : memref<64x256xbf16, #tpu.memory_space<vmem>>, vector<64x256xbf16>
    %cst_76 = arith.constant dense<0.000000e+00> : vector<8x256xf32>
    %143 = tpu.matmul %141, %142, %cst_76 {dimension_numbers = #tpu.dot_dimension_numbers<[1], [0], [0], [1], [0, 0, 1, 1], [], []>} : vector<8x64xbf16>, vector<64x256xbf16>, vector<8x256xf32> -> vector<8x256xf32>
    %144 = arith.truncf %123 : vector<8x128xf32> to vector<8x128xbf16>
    %c0_77 = arith.constant 0 : index
    %c0_78 = arith.constant 0 : index
    %145 = vector.load %arg4[%c0_77, %c0_78] : memref<128x256xbf16, #tpu.memory_space<vmem>>, vector<128x256xbf16>
    %cst_79 = arith.constant dense<0.000000e+00> : vector<8x256xf32>
    %146 = tpu.matmul %144, %145, %cst_79 {dimension_numbers = #tpu.dot_dimension_numbers<[1], [0], [0], [1], [0, 0, 1, 1], [], []>} : vector<8x128xbf16>, vector<128x256xbf16>, vector<8x256xf32> -> vector<8x256xf32>
    %147 = arith.addf %143, %146 : vector<8x256xf32>
    %c0_80 = arith.constant 0 : index
    %c0_81 = arith.constant 0 : index
    %148 = vector.load %arg5[%c0_80, %c0_81] : memref<8x256xf32, #tpu.memory_space<vmem>>, vector<8x256xf32>
    %149 = arith.addf %147, %148 : vector<8x256xf32>
    %150 = vector.extract_strided_slice %149 {offsets = [0, 128], sizes = [8, 128], strides = [1, 1]} : vector<8x256xf32> to vector<8x128xf32>
    %151 = vector.extract_strided_slice %149 {offsets = [0, 0], sizes = [8, 128], strides = [1, 1]} : vector<8x256xf32> to vector<8x128xf32>
    %cst_82 = arith.constant dense<0xFF800000> : vector<8xf32>
    %152 = vector.multi_reduction <maximumf>, %151, %cst_82 [1] : vector<8x128xf32> to vector<8xf32>
    %153 = vector.shape_cast %152 : vector<8xf32> to vector<8x1xf32>
    %154 = vector.broadcast %153 : vector<8x1xf32> to vector<8x128xf32>
    %155 = arith.subf %151, %154 : vector<8x128xf32>
    %156 = math.exp %155 : vector<8x128xf32>
    %cst_83 = arith.constant dense<0.000000e+00> : vector<8xf32>
    %157 = vector.multi_reduction <add>, %156, %cst_83 [1] : vector<8x128xf32> to vector<8xf32>
    %158 = vector.shape_cast %157 : vector<8xf32> to vector<8x1xf32>
    %159 = math.log %158 : vector<8x1xf32>
    %160 = vector.broadcast %159 : vector<8x1xf32> to vector<8x128xf32>
    %161 = arith.subf %155, %160 : vector<8x128xf32>
    %162 = arith.index_cast %c5_i32 : i32 to index
    %c0_84 = arith.constant 0 : index
    %c0_85 = arith.constant 0 : index
    %163 = vector.load %arg6[%162, %c0_84, %c0_85] : memref<8x8x128xf32, #tpu.memory_space<vmem>>, vector<1x8x128xf32>
    %164 = vector.shape_cast %163 : vector<1x8x128xf32> to vector<8x128xf32>
    %165 = vector.shape_cast %161 : vector<8x128xf32> to vector<1x8x128xf32>
    tpu.vector_store %arg6[%162, %c0_84, %c0_85], %165 {strides = array<i32>} : memref<8x8x128xf32, #tpu.memory_space<vmem>>, vector<1x8x128xf32>,
    %c6_i32 = arith.constant 6 : i32
    %166 = arith.index_cast %c6_i32 : i32 to index
    %c0_86 = arith.constant 0 : index
    %c0_87 = arith.constant 0 : index
    %167 = vector.load %arg1[%166, %c0_86, %c0_87] : memref<8x8x64xbf16, #tpu.memory_space<vmem>>, vector<1x8x64xbf16>
    %168 = vector.shape_cast %167 : vector<1x8x64xbf16> to vector<8x64xbf16>
    %c0_88 = arith.constant 0 : index
    %c0_89 = arith.constant 0 : index
    %169 = vector.load %arg3[%c0_88, %c0_89] : memref<64x256xbf16, #tpu.memory_space<vmem>>, vector<64x256xbf16>
    %cst_90 = arith.constant dense<0.000000e+00> : vector<8x256xf32>
    %170 = tpu.matmul %168, %169, %cst_90 {dimension_numbers = #tpu.dot_dimension_numbers<[1], [0], [0], [1], [0, 0, 1, 1], [], []>} : vector<8x64xbf16>, vector<64x256xbf16>, vector<8x256xf32> -> vector<8x256xf32>
    %171 = arith.truncf %150 : vector<8x128xf32> to vector<8x128xbf16>
    %c0_91 = arith.constant 0 : index
    %c0_92 = arith.constant 0 : index
    %172 = vector.load %arg4[%c0_91, %c0_92] : memref<128x256xbf16, #tpu.memory_space<vmem>>, vector<128x256xbf16>
    %cst_93 = arith.constant dense<0.000000e+00> : vector<8x256xf32>
    %173 = tpu.matmul %171, %172, %cst_93 {dimension_numbers = #tpu.dot_dimension_numbers<[1], [0], [0], [1], [0, 0, 1, 1], [], []>} : vector<8x128xbf16>, vector<128x256xbf16>, vector<8x256xf32> -> vector<8x256xf32>
    %174 = arith.addf %170, %173 : vector<8x256xf32>
    %c0_94 = arith.constant 0 : index
    %c0_95 = arith.constant 0 : index
    %175 = vector.load %arg5[%c0_94, %c0_95] : memref<8x256xf32, #tpu.memory_space<vmem>>, vector<8x256xf32>
    %176 = arith.addf %174, %175 : vector<8x256xf32>
    %177 = vector.extract_strided_slice %176 {offsets = [0, 128], sizes = [8, 128], strides = [1, 1]} : vector<8x256xf32> to vector<8x128xf32>
    %178 = vector.extract_strided_slice %176 {offsets = [0, 0], sizes = [8, 128], strides = [1, 1]} : vector<8x256xf32> to vector<8x128xf32>
    %cst_96 = arith.constant dense<0xFF800000> : vector<8xf32>
    %179 = vector.multi_reduction <maximumf>, %178, %cst_96 [1] : vector<8x128xf32> to vector<8xf32>
    %180 = vector.shape_cast %179 : vector<8xf32> to vector<8x1xf32>
    %181 = vector.broadcast %180 : vector<8x1xf32> to vector<8x128xf32>
    %182 = arith.subf %178, %181 : vector<8x128xf32>
    %183 = math.exp %182 : vector<8x128xf32>
    %cst_97 = arith.constant dense<0.000000e+00> : vector<8xf32>
    %184 = vector.multi_reduction <add>, %183, %cst_97 [1] : vector<8x128xf32> to vector<8xf32>
    %185 = vector.shape_cast %184 : vector<8xf32> to vector<8x1xf32>
    %186 = math.log %185 : vector<8x1xf32>
    %187 = vector.broadcast %186 : vector<8x1xf32> to vector<8x128xf32>
    %188 = arith.subf %182, %187 : vector<8x128xf32>
    %189 = arith.index_cast %c6_i32 : i32 to index
    %c0_98 = arith.constant 0 : index
    %c0_99 = arith.constant 0 : index
    %190 = vector.load %arg6[%189, %c0_98, %c0_99] : memref<8x8x128xf32, #tpu.memory_space<vmem>>, vector<1x8x128xf32>
    %191 = vector.shape_cast %190 : vector<1x8x128xf32> to vector<8x128xf32>
    %192 = vector.shape_cast %188 : vector<8x128xf32> to vector<1x8x128xf32>
    tpu.vector_store %arg6[%189, %c0_98, %c0_99], %192 {strides = array<i32>} : memref<8x8x128xf32, #tpu.memory_space<vmem>>, vector<1x8x128xf32>,
    %c7_i32 = arith.constant 7 : i32
    %193 = arith.index_cast %c7_i32 : i32 to index
    %c0_100 = arith.constant 0 : index
    %c0_101 = arith.constant 0 : index
    %194 = vector.load %arg1[%193, %c0_100, %c0_101] : memref<8x8x64xbf16, #tpu.memory_space<vmem>>, vector<1x8x64xbf16>
    %195 = vector.shape_cast %194 : vector<1x8x64xbf16> to vector<8x64xbf16>
    %c0_102 = arith.constant 0 : index
    %c0_103 = arith.constant 0 : index
    %196 = vector.load %arg3[%c0_102, %c0_103] : memref<64x256xbf16, #tpu.memory_space<vmem>>, vector<64x256xbf16>
    %cst_104 = arith.constant dense<0.000000e+00> : vector<8x256xf32>
    %197 = tpu.matmul %195, %196, %cst_104 {dimension_numbers = #tpu.dot_dimension_numbers<[1], [0], [0], [1], [0, 0, 1, 1], [], []>} : vector<8x64xbf16>, vector<64x256xbf16>, vector<8x256xf32> -> vector<8x256xf32>
    %198 = arith.truncf %177 : vector<8x128xf32> to vector<8x128xbf16>
    %c0_105 = arith.constant 0 : index
    %c0_106 = arith.constant 0 : index
    %199 = vector.load %arg4[%c0_105, %c0_106] : memref<128x256xbf16, #tpu.memory_space<vmem>>, vector<128x256xbf16>
    %cst_107 = arith.constant dense<0.000000e+00> : vector<8x256xf32>
    %200 = tpu.matmul %198, %199, %cst_107 {dimension_numbers = #tpu.dot_dimension_numbers<[1], [0], [0], [1], [0, 0, 1, 1], [], []>} : vector<8x128xbf16>, vector<128x256xbf16>, vector<8x256xf32> -> vector<8x256xf32>
    %201 = arith.addf %197, %200 : vector<8x256xf32>
    %c0_108 = arith.constant 0 : index
    %c0_109 = arith.constant 0 : index
    %202 = vector.load %arg5[%c0_108, %c0_109] : memref<8x256xf32, #tpu.memory_space<vmem>>, vector<8x256xf32>
    %203 = arith.addf %201, %202 : vector<8x256xf32>
    %204 = vector.extract_strided_slice %203 {offsets = [0, 128], sizes = [8, 128], strides = [1, 1]} : vector<8x256xf32> to vector<8x128xf32>
    %205 = vector.extract_strided_slice %203 {offsets = [0, 0], sizes = [8, 128], strides = [1, 1]} : vector<8x256xf32> to vector<8x128xf32>
    %cst_110 = arith.constant dense<0xFF800000> : vector<8xf32>
    %206 = vector.multi_reduction <maximumf>, %205, %cst_110 [1] : vector<8x128xf32> to vector<8xf32>
    %207 = vector.shape_cast %206 : vector<8xf32> to vector<8x1xf32>
    %208 = vector.broadcast %207 : vector<8x1xf32> to vector<8x128xf32>
    %209 = arith.subf %205, %208 : vector<8x128xf32>
    %210 = math.exp %209 : vector<8x128xf32>
    %cst_111 = arith.constant dense<0.000000e+00> : vector<8xf32>
    %211 = vector.multi_reduction <add>, %210, %cst_111 [1] : vector<8x128xf32> to vector<8xf32>
    %212 = vector.shape_cast %211 : vector<8xf32> to vector<8x1xf32>
    %213 = math.log %212 : vector<8x1xf32>
    %214 = vector.broadcast %213 : vector<8x1xf32> to vector<8x128xf32>
    %215 = arith.subf %209, %214 : vector<8x128xf32>
    %216 = arith.index_cast %c7_i32 : i32 to index
    %c0_112 = arith.constant 0 : index
    %c0_113 = arith.constant 0 : index
    %217 = vector.load %arg6[%216, %c0_112, %c0_113] : memref<8x8x128xf32, #tpu.memory_space<vmem>>, vector<1x8x128xf32>
    %218 = vector.shape_cast %217 : vector<1x8x128xf32> to vector<8x128xf32>
    %219 = vector.shape_cast %215 : vector<8x128xf32> to vector<1x8x128xf32>
    tpu.vector_store %arg6[%216, %c0_112, %c0_113], %219 {strides = array<i32>} : memref<8x8x128xf32, #tpu.memory_space<vmem>>, vector<1x8x128xf32>,
    %c8_i32 = arith.constant 8 : i32
    %c0_114 = arith.constant 0 : index
    %c0_115 = arith.constant 0 : index
    %220 = vector.load %arg7[%c0_114, %c0_115] : memref<8x128xf32, #tpu.memory_space<vmem>>, vector<8x128xf32>
    tpu.vector_store %arg7[%c0_114, %c0_115], %204 {strides = array<i32>} : memref<8x128xf32, #tpu.memory_space<vmem>>, vector<8x128xf32>,
    return
  }
  func.func @transform_0(%arg0: i32) -> (i32, i32, i32) {
    %c0_i32 = arith.constant 0 : i32
    %c0_i32_0 = arith.constant 0 : i32
    %c0_i32_1 = arith.constant 0 : i32
    return %arg0, %c0_i32, %c0_i32_0 : i32, i32, i32
  }
  func.func @transform_1(%arg0: i32) -> (i32, i32) {
    %c0_i32 = arith.constant 0 : i32
    %c0_i32_0 = arith.constant 0 : i32
    %c0_i32_1 = arith.constant 0 : i32
    return %c0_i32, %c0_i32_0 : i32, i32
  }
  func.func @transform_2(%arg0: i32) -> (i32, i32) {
    %c0_i32 = arith.constant 0 : i32
    %c0_i32_0 = arith.constant 0 : i32
    %c0_i32_1 = arith.constant 0 : i32
    return %c0_i32, %c0_i32_0 : i32, i32
  }
  func.func @transform_3(%arg0: i32) -> (i32, i32) {
    %c0_i32 = arith.constant 0 : i32
    %c0_i32_0 = arith.constant 0 : i32
    %c0_i32_1 = arith.constant 0 : i32
    return %c0_i32, %c0_i32_0 : i32, i32
  }
  func.func @transform_4(%arg0: i32) -> (i32, i32) {
    %c0_i32 = arith.constant 0 : i32
    %c0_i32_0 = arith.constant 0 : i32
    %c0_i32_1 = arith.constant 0 : i32
    return %c0_i32, %c0_i32_0 : i32, i32
  }
  func.func @transform_5(%arg0: i32) -> (i32, i32, i32) {
    %c0_i32 = arith.constant 0 : i32
    %c0_i32_0 = arith.constant 0 : i32
    %c0_i32_1 = arith.constant 0 : i32
    return %arg0, %c0_i32, %c0_i32_0 : i32, i32, i32
  }
  func.func @transform_6(%arg0: i32) -> (i32, i32) {
    %c0_i32 = arith.constant 0 : i32
    %c0_i32_0 = arith.constant 0 : i32
    %c0_i32_1 = arith.constant 0 : i32
    return %c0_i32, %c0_i32_0 : i32, i32
  }
}

</mosaic_0001>

<llo_original>
// kernel: rnn_sequence_forward.1
$region0: #{rnn_sequence_forward.1}
  #allocation0 [shape = 'u32[]', space=smem, size = 0x4, offset = 0x4, fixed_abs, tag = 'smem constant byte address 0x4 - core index']
  #allocation1 [shape = 'u32[72,128]{1,0:T(1,128)}', space=vmem, size = 0x9000, scoped, tag = 'internal scratch']
  %s0 = inlined_call_operand.vmem [shape: bf16[8,8,64], index: 0, kind: input, shape index: {}]
  %s1 = inlined_call_operand.vmem [shape: f32[8,128], index: 1, kind: input, shape index: {}]
  %s2 = inlined_call_operand.vmem [shape: bf16[64,256], index: 2, kind: input, shape index: {}]
  %s3 = inlined_call_operand.hbm [shape: bf16[128,256], index: 3, kind: input, shape index: {}]
  %s4 = inlined_call_operand.vmem [shape: f32[8,256], index: 4, kind: input, shape index: {}]
  %s5 = inlined_call_operand.hbm [shape: f32[8,8,128], index: 5, kind: output, shape index: {0}]
  %s6 = inlined_call_operand.hbm [shape: f32[8,128], index: 6, kind: output, shape index: {1}]
  %7 = xla_tuple %s5, %s6
  %s8 = sld [smem:[#allocation0]]
  $region46: #{rnn_sequence_forward.1} parent=0
    _
  %s10 = ssub.s32 1, %s8
  %s11 = scalar_select 0, %s10, %s8
  $region1: #{rnn_sequence_forward.1} parent=0
    #allocation2 [shape = 'u8[65536]{0}', space=vmem, size = 0x10000, scoped, tag = 'input window, operand 3, single buffered']
    #allocation3 [shape = 's32[1]{0}', space=sflag, size = 0x4, scoped, tag = 'scoped memory for rnn_sequence_forward.1']
    #allocation4 [shape = 's32[1]{0}', space=sflag, size = 0x4, scoped, tag = 'scoped memory for rnn_sequence_forward.1']
    #allocation5 [shape = 'u8[32768]{0}', space=vmem, size = 0x8000, scoped, tag = 'output window, operand 0, single buffered']
    #allocation6 [shape = 'u8[4096]{0}', space=vmem, size = 0x1000, scoped, tag = 'output window, operand 1, single buffered']
    #allocation7 [shape = 's32[1]{0}', space=sflag, size = 0x4, scoped, tag = 'scoped memory for rnn_sequence_forward.1']
    %12 = vsyncpa [#allocation3], 0
    %13 = vsyncpa [#allocation4], 0
    %14 = vsyncpa [#allocation7], 0
    // Predicated region
    $region2: #{rnn_sequence_forward.1} parent=1 // pred_check
      _
    $region3: #{rnn_sequence_forward.1} parent=1 // pred_check_branch
      %16 = sbr.rel (0) target = $region5
    $region4: #{rnn_sequence_forward.1} parent=1 // pred_region
      _
    $region5: #{rnn_sequence_forward.1} parent=1 // pred_fallthru
      _
    // Predicated region
    $region6: #{rnn_sequence_forward.1} parent=1 // pred_check
      _
    $region7: #{rnn_sequence_forward.1} parent=1 // pred_check_branch
      %18 = sbr.rel (0) target = $region9
    $region8: #{rnn_sequence_forward.1} parent=1 // pred_region
      _
    $region9: #{rnn_sequence_forward.1} parent=1 // pred_fallthru
      _
    // Predicated region
    $region10: #{rnn_sequence_forward.1} parent=1 // pred_check
      _
    $region11: #{rnn_sequence_forward.1} parent=1 // pred_check_branch
      %20 = sbr.rel (0) target = $region13
    $region12: #{rnn_sequence_forward.1} parent=1 // pred_region
      _
    $region13: #{rnn_sequence_forward.1} parent=1 // pred_fallthru
      _
    // Predicated region
    $region14: #{rnn_sequence_forward.1} parent=1 // pred_check
      _
    $region15: #{rnn_sequence_forward.1} parent=1 // pred_check_branch
      %22 = sbr.rel (0) target = $region17
    $region16: #{rnn_sequence_forward.1} parent=1 // pred_region
      %24 = vsyncadd [#allocation3], 0
      %s25 = sshll.u32 %s3, 4
      %s26 = int_to_ptr.hbm [resolvable:$true] %s25
      %s27 = sshll.u32 [#allocation2], 4
      %s28 = int_to_ptr.vmem [resolvable:$true] %s27
      %33 = dma.hbm_to_vmem [thread:$0]  %s26, 2048, %s28, [#allocation3], 128, 128, 8
    $region17: #{rnn_sequence_forward.1} parent=1 // pred_fallthru
      _
    // Predicated region
    $region18: #{rnn_sequence_forward.1} parent=1 // pred_check
      _
    $region19: #{rnn_sequence_forward.1} parent=1 // pred_check_branch
      %35 = sbr.rel (0) target = $region21
    $region20: #{rnn_sequence_forward.1} parent=1 // pred_region
      _
    $region21: #{rnn_sequence_forward.1} parent=1 // pred_fallthru
      _
    // Predicated region
    $region22: #{rnn_sequence_forward.1} parent=1 // pred_check
      _
    $region23: #{rnn_sequence_forward.1} parent=1 // pred_check_branch
      %37 = sbr.rel (0) target = $region25
    $region24: #{rnn_sequence_forward.1} parent=1 // pred_region
      %39 = dma.done [#allocation3], 2048
    $region25: #{rnn_sequence_forward.1} parent=1 // pred_fallthru
      _
    %p41 = scmp.eq.s32.totalorder 0, 0
    // Predicated region
    $region26: #{rnn_sequence_forward.1} parent=1 // pred_check
      %p42 = pneg %p41
    $region27: #{rnn_sequence_forward.1} parent=1 // pred_check_branch
      %44 = sbr.rel (%p42) target = $region29
    $region28: #{rnn_sequence_forward.1} parent=1 // pred_region
      %v45 = vld [vmem:[%s1] sm:$0xff]
      %46 = vst [vmem:[#allocation6] sm:$0xff] %v45
    $region29: #{rnn_sequence_forward.1} parent=1 // pred_fallthru
      _
    %v47 = vld [vmem:[#allocation6] sm:$0xff]
    %v48 = vld [vmem:[%s0] sm:$0xf]
    %v49 = vld [vmem:[%s2] sm:$0xff]
    %v50 = vld [vmem:[%s2 + $0x8] sm:$0xff]
    %v51 = vld [vmem:[%s2 + $0x10] sm:$0xff]
    %v52 = vld [vmem:[%s2 + $0x18] sm:$0xff]
    %v53 = vld [vmem:[%s2 + $0x20] sm:$0xff]
    %v54 = vld [vmem:[%s2 + $0x28] sm:$0xff]
    %v55 = vld [vmem:[%s2 + $0x30] sm:$0xff]
    %v56 = vld [vmem:[%s2 + $0x38] sm:$0xff]
    %v57 = vpack.c.bf16 %v47, %v47
    %v58 = vld [vmem:[#allocation2] sm:$0xff]
    %v59 = vld [vmem:[#allocation2 + $0x8] sm:$0xff]
    %v60 = vld [vmem:[#allocation2 + $0x10] sm:$0xff]
    %v61 = vld [vmem:[#allocation2 + $0x18] sm:$0xff]
    %v62 = vld [vmem:[#allocation2 + $0x20] sm:$0xff]
    %v63 = vld [vmem:[#allocation2 + $0x28] sm:$0xff]
    %v64 = vld [vmem:[#allocation2 + $0x30] sm:$0xff]
    %v65 = vld [vmem:[#allocation2 + $0x38] sm:$0xff]
    %v66 = vld [vmem:[#allocation2 + $0x40] sm:$0xff]
    %v67 = vld [vmem:[#allocation2 + $0x48] sm:$0xff]
    %v68 = vld [vmem:[#allocation2 + $0x50] sm:$0xff]
    %v69 = vld [vmem:[#allocation2 + $0x58] sm:$0xff]
    %v70 = vld [vmem:[#allocation2 + $0x60] sm:$0xff]
    %v71 = vld [vmem:[#allocation2 + $0x68] sm:$0xff]
    %v72 = vld [vmem:[#allocation2 + $0x70] sm:$0xff]
    %v73 = vld [vmem:[#allocation2 + $0x78] sm:$0xff]
    %v90 = vunpack.c.l.b16 %v58
    %v91 = vunpack.c.h.b16 %v58
    %v92 = vunpack.c.l.b16 %v59
    %v93 = vunpack.c.h.b16 %v59
    %v94 = vunpack.c.l.b16 %v60
    %v95 = vunpack.c.h.b16 %v60
    %v96 = vunpack.c.l.b16 %v61
    %v97 = vunpack.c.h.b16 %v61
    %v98 = vunpack.c.l.b16 %v62
    %v99 = vunpack.c.h.b16 %v62
    %v100 = vunpack.c.l.b16 %v63
    %v101 = vunpack.c.h.b16 %v63
    %v102 = vunpack.c.l.b16 %v64
    %v103 = vunpack.c.h.b16 %v64
    %v104 = vunpack.c.l.b16 %v65
    %v105 = vunpack.c.h.b16 %v65
    %v106 = vunpack.c.l.b16 %v66
    %v107 = vunpack.c.h.b16 %v66
    %v108 = vunpack.c.l.b16 %v67
    %v109 = vunpack.c.h.b16 %v67
    %v110 = vunpack.c.l.b16 %v68
    %v111 = vunpack.c.h.b16 %v68
    %v112 = vunpack.c.l.b16 %v69
    %v113 = vunpack.c.h.b16 %v69
    %v114 = vunpack.c.l.b16 %v70
    %v115 = vunpack.c.h.b16 %v70
    %v116 = vunpack.c.l.b16 %v71
    %v117 = vunpack.c.h.b16 %v71
    %v118 = vunpack.c.l.b16 %v72
    %v119 = vunpack.c.h.b16 %v72
    %v120 = vunpack.c.l.b16 %v73
    %v121 = vunpack.c.h.b16 %v73
    %v122 = vpack.c.b16 %v92, %v90
    %v123 = vpack.c.b16 %v93, %v91
    %v124 = vpack.c.b16 %v96, %v94
    %v125 = vpack.c.b16 %v97, %v95
    %v126 = vpack.c.b16 %v100, %v98
    %v127 = vpack.c.b16 %v101, %v99
    %v128 = vpack.c.b16 %v104, %v102
    %v129 = vpack.c.b16 %v105, %v103
    %v130 = vpack.c.b16 %v108, %v106
    %v131 = vpack.c.b16 %v109, %v107
    %v132 = vpack.c.b16 %v112, %v110
    %v133 = vpack.c.b16 %v113, %v111
    %v134 = vpack.c.b16 %v116, %v114
    %v135 = vpack.c.b16 %v117, %v115
    %v136 = vpack.c.b16 %v120, %v118
    %v137 = vpack.c.b16 %v121, %v119
    %154 = vmatpush.bf16.msra.mxu0 %v136
    %155 = vmatpush.bf16.msra.mxu0 %v134
    %156 = vmatpush.bf16.msra.mxu0 %v132
    %157 = vmatpush.bf16.msra.mxu0 %v130
    %158 = vmatpush.bf16.msra.mxu0 %v128
    %159 = vmatpush.bf16.msra.mxu0 %v126
    %160 = vmatpush.bf16.msra.mxu0 %v124
    %161 = vmatpush.bf16.msra.mxu0 %v122
    %162 = vmatmul.bf16.gmra.mxu0 %v57
    %v163 = vpop.f32.mrf.mxu0
    %v164 = vadd.f32 0.0, %v163
    %v165 = vpop.f32.mrf.mxu0
    %166 = vdwg.mxu0
    %167 = vmatpush.bf16.msra.mxu0 %v137
    %168 = vmatpush.bf16.msra.mxu0 %v135
    %169 = vmatpush.bf16.msra.mxu0 %v133
    %170 = vmatpush.bf16.msra.mxu0 %v131
    %171 = vmatpush.bf16.msra.mxu0 %v129
    %172 = vmatpush.bf16.msra.mxu0 %v127
    %173 = vmatpush.bf16.msra.mxu0 %v125
    %174 = vmatpush.bf16.msra.mxu0 %v123
    %175 = vmatmul.bf16.gmra.mxu0 %v57
    %v176 = vpop.f32.mrf.mxu0
    %v177 = vadd.f32 0.0, %v176
    %v178 = vpop.f32.mrf.mxu0
    %179 = vdwg.mxu0
    %v188 = vunpack.c.l.b16 %v49
    %v189 = vunpack.c.h.b16 %v49
    %v190 = vunpack.c.l.b16 %v50
    %v191 = vunpack.c.h.b16 %v50
    %v192 = vunpack.c.l.b16 %v51
    %v193 = vunpack.c.h.b16 %v51
    %v194 = vunpack.c.l.b16 %v52
    %v195 = vunpack.c.h.b16 %v52
    %v196 = vunpack.c.l.b16 %v53
    %v197 = vunpack.c.h.b16 %v53
    %v198 = vunpack.c.l.b16 %v54
    %v199 = vunpack.c.h.b16 %v54
    %v200 = vunpack.c.l.b16 %v55
    %v201 = vunpack.c.h.b16 %v55
    %v202 = vunpack.c.l.b16 %v56
    %v203 = vunpack.c.h.b16 %v56
    %v204 = vpack.c.b16 %v190, %v188
    %v205 = vpack.c.b16 %v191, %v189
    %v206 = vpack.c.b16 %v194, %v192
    %v207 = vpack.c.b16 %v195, %v193
    %v208 = vpack.c.b16 %v198, %v196
    %v209 = vpack.c.b16 %v199, %v197
    %v210 = vpack.c.b16 %v202, %v200
    %v211 = vpack.c.b16 %v203, %v201
    %vm220 = vcmask 523264
    %v222 = vsel %vm220, %v48, 0
    %224 = vmatpush.bf16.msra.mxu0 0
    %225 = vmatpush.bf16.msra.mxu0 0
    %226 = vmatpush.bf16.msra.mxu0 0
    %227 = vmatpush.bf16.msra.mxu0 0
    %228 = vmatpush.bf16.msra.mxu0 %v210
    %229 = vmatpush.bf16.msra.mxu0 %v208
    %230 = vmatpush.bf16.msra.mxu0 %v206
    %231 = vmatpush.bf16.msra.mxu0 %v204
    %232 = vmatmul.bf16.gmra.mxu0 %v222
    %v233 = vpop.f32.mrf.mxu0
    %v234 = vadd.f32 %v164, %v233
    %v235 = vpop.f32.mrf.mxu0
    %236 = vdwg.mxu0
    %237 = vmatpush.bf16.msra.mxu0 0
    %238 = vmatpush.bf16.msra.mxu0 0
    %239 = vmatpush.bf16.msra.mxu0 0
    %240 = vmatpush.bf16.msra.mxu0 0
    %241 = vmatpush.bf16.msra.mxu0 %v211
    %242 = vmatpush.bf16.msra.mxu0 %v209
    %243 = vmatpush.bf16.msra.mxu0 %v207
    %244 = vmatpush.bf16.msra.mxu0 %v205
    %245 = vmatmul.bf16.gmra.mxu0 %v222
    %v246 = vpop.f32.mrf.mxu0
    %v247 = vadd.f32 %v177, %v246
    %v248 = vpop.f32.mrf.mxu0
    %249 = vdwg.mxu0
    %v250 = vld [vmem:[%s4] sm:$0xff]
    %v251 = vld [vmem:[%s4 + $0x8] sm:$0xff]
    %v252 = vadd.f32 %v234, %v250
    %v253 = vadd.f32 %v247, %v251
    %254 = vmax.xlane.f32.xlu0 %v252
    %v255 = vpop.xlane.xlu0 %254
    %v256 = vsub.f32 %v252, %v255
    %v257 = vmul.f32 %v256, 1.442695
    %v258 = vpow.pop %v257
    %259 = vadd.xlane.f32.xlu0 %v258
    %v260 = vpop.xlane.xlu0 %259
    %v261 = vlog2.pop %v260
    %v262 = vmul.f32 %v261, 0.6931472
    %v263 = vsub.f32 %v256, %v262
    %264 = vst [vmem:[#allocation5] sm:$0xff] %v263
    %s265 = scalar_lea.vmem %s0, 4
    %v266 = vld [vmem:[%s265] sm:$0xf]
    %v267 = vld [vmem:[%s2] sm:$0xff]
    %v268 = vld [vmem:[%s2 + $0x8] sm:$0xff]
    %v269 = vld [vmem:[%s2 + $0x10] sm:$0xff]
    %v270 = vld [vmem:[%s2 + $0x18] sm:$0xff]
    %v271 = vld [vmem:[%s2 + $0x20] sm:$0xff]
    %v272 = vld [vmem:[%s2 + $0x28] sm:$0xff]
    %v273 = vld [vmem:[%s2 + $0x30] sm:$0xff]
    %v274 = vld [vmem:[%s2 + $0x38] sm:$0xff]
    %v275 = vpack.c.bf16 %v253, %v253
    %v276 = vld [vmem:[#allocation2] sm:$0xff]
    %v277 = vld [vmem:[#allocation2 + $0x8] sm:$0xff]
    %v278 = vld [vmem:[#allocation2 + $0x10] sm:$0xff]
    %v279 = vld [vmem:[#allocation2 + $0x18] sm:$0xff]
    %v280 = vld [vmem:[#allocation2 + $0x20] sm:$0xff]
    %v281 = vld [vmem:[#allocation2 + $0x28] sm:$0xff]
    %v282 = vld [vmem:[#allocation2 + $0x30] sm:$0xff]
    %v283 = vld [vmem:[#allocation2 + $0x38] sm:$0xff]
    %v284 = vld [vmem:[#allocation2 + $0x40] sm:$0xff]
    %v285 = vld [vmem:[#allocation2 + $0x48] sm:$0xff]
    %v286 = vld [vmem:[#allocation2 + $0x50] sm:$0xff]
    %v287 = vld [vmem:[#allocation2 + $0x58] sm:$0xff]
    %v288 = vld [vmem:[#allocation2 + $0x60] sm:$0xff]
    %v289 = vld [vmem:[#allocation2 + $0x68] sm:$0xff]
    %v290 = vld [vmem:[#allocation2 + $0x70] sm:$0xff]
    %v291 = vld [vmem:[#allocation2 + $0x78] sm:$0xff]
    %v308 = vunpack.c.l.b16 %v276
    %v309 = vunpack.c.h.b16 %v276
    %v310 = vunpack.c.l.b16 %v277
    %v311 = vunpack.c.h.b16 %v277
    %v312 = vunpack.c.l.b16 %v278
    %v313 = vunpack.c.h.b16 %v278
    %v314 = vunpack.c.l.b16 %v279
    %v315 = vunpack.c.h.b16 %v279
    %v316 = vunpack.c.l.b16 %v280
    %v317 = vunpack.c.h.b16 %v280
    %v318 = vunpack.c.l.b16 %v281
    %v319 = vunpack.c.h.b16 %v281
    %v320 = vunpack.c.l.b16 %v282
    %v321 = vunpack.c.h.b16 %v282
    %v322 = vunpack.c.l.b16 %v283
    %v323 = vunpack.c.h.b16 %v283
    %v324 = vunpack.c.l.b16 %v284
    %v325 = vunpack.c.h.b16 %v284
    %v326 = vunpack.c.l.b16 %v285
    %v327 = vunpack.c.h.b16 %v285
    %v328 = vunpack.c.l.b16 %v286
    %v329 = vunpack.c.h.b16 %v286
    %v330 = vunpack.c.l.b16 %v287
    %v331 = vunpack.c.h.b16 %v287
    %v332 = vunpack.c.l.b16 %v288
    %v333 = vunpack.c.h.b16 %v288
    %v334 = vunpack.c.l.b16 %v289
    %v335 = vunpack.c.h.b16 %v289
    %v336 = vunpack.c.l.b16 %v290
    %v337 = vunpack.c.h.b16 %v290
    %v338 = vunpack.c.l.b16 %v291
    %v339 = vunpack.c.h.b16 %v291
    %v340 = vpack.c.b16 %v310, %v308
    %v341 = vpack.c.b16 %v311, %v309
    %v342 = vpack.c.b16 %v314, %v312
    %v343 = vpack.c.b16 %v315, %v313
    %v344 = vpack.c.b16 %v318, %v316
    %v345 = vpack.c.b16 %v319, %v317
    %v346 = vpack.c.b16 %v322, %v320
    %v347 = vpack.c.b16 %v323, %v321
    %v348 = vpack.c.b16 %v326, %v324
    %v349 = vpack.c.b16 %v327, %v325
    %v350 = vpack.c.b16 %v330, %v328
    %v351 = vpack.c.b16 %v331, %v329
    %v352 = vpack.c.b16 %v334, %v332
    %v353 = vpack.c.b16 %v335, %v333
    %v354 = vpack.c.b16 %v338, %v336
    %v355 = vpack.c.b16 %v339, %v337
    %372 = vmatpush.bf16.msra.mxu0 %v354
    %373 = vmatpush.bf16.msra.mxu0 %v352
    %374 = vmatpush.bf16.msra.mxu0 %v350
    %375 = vmatpush.bf16.msra.mxu0 %v348
    %376 = vmatpush.bf16.msra.mxu0 %v346
    %377 = vmatpush.bf16.msra.mxu0 %v344
    %378 = vmatpush.bf16.msra.mxu0 %v342
    %379 = vmatpush.bf16.msra.mxu0 %v340
    %380 = vmatmul.bf16.gmra.mxu0 %v275
    %v381 = vpop.f32.mrf.mxu0
    %v382 = vadd.f32 0.0, %v381
    %v383 = vpop.f32.mrf.mxu0
    %384 = vdwg.mxu0
    %385 = vmatpush.bf16.msra.mxu0 %v355
    %386 = vmatpush.bf16.msra.mxu0 %v353
    %387 = vmatpush.bf16.msra.mxu0 %v351
    %388 = vmatpush.bf16.msra.mxu0 %v349
    %389 = vmatpush.bf16.msra.mxu0 %v347
    %390 = vmatpush.bf16.msra.mxu0 %v345
    %391 = vmatpush.bf16.msra.mxu0 %v343
    %392 = vmatpush.bf16.msra.mxu0 %v341
    %393 = vmatmul.bf16.gmra.mxu0 %v275
    %v394 = vpop.f32.mrf.mxu0
    %v395 = vadd.f32 0.0, %v394
    %v396 = vpop.f32.mrf.mxu0
    %397 = vdwg.mxu0
    %v406 = vunpack.c.l.b16 %v267
    %v407 = vunpack.c.h.b16 %v267
    %v408 = vunpack.c.l.b16 %v268
    %v409 = vunpack.c.h.b16 %v268
    %v410 = vunpack.c.l.b16 %v269
    %v411 = vunpack.c.h.b16 %v269
    %v412 = vunpack.c.l.b16 %v270
    %v413 = vunpack.c.h.b16 %v270
    %v414 = vunpack.c.l.b16 %v271
    %v415 = vunpack.c.h.b16 %v271
    %v416 = vunpack.c.l.b16 %v272
    %v417 = vunpack.c.h.b16 %v272
    %v418 = vunpack.c.l.b16 %v273
    %v419 = vunpack.c.h.b16 %v273
    %v420 = vunpack.c.l.b16 %v274
    %v421 = vunpack.c.h.b16 %v274
    %v422 = vpack.c.b16 %v408, %v406
    %v423 = vpack.c.b16 %v409, %v407
    %v424 = vpack.c.b16 %v412, %v410
    %v425 = vpack.c.b16 %v413, %v411
    %v426 = vpack.c.b16 %v416, %v414
    %v427 = vpack.c.b16 %v417, %v415
    %v428 = vpack.c.b16 %v420, %v418
    %v429 = vpack.c.b16 %v421, %v419
    %v439 = vsel %vm220, %v266, 0
    %441 = vmatpush.bf16.msra.mxu0 0
    %442 = vmatpush.bf16.msra.mxu0 0
    %443 = vmatpush.bf16.msra.mxu0 0
    %444 = vmatpush.bf16.msra.mxu0 0
    %445 = vmatpush.bf16.msra.mxu0 %v428
    %446 = vmatpush.bf16.msra.mxu0 %v426
    %447 = vmatpush.bf16.msra.mxu0 %v424
    %448 = vmatpush.bf16.msra.mxu0 %v422
    %449 = vmatmul.bf16.gmra.mxu0 %v439
    %v450 = vpop.f32.mrf.mxu0
    %v451 = vadd.f32 %v382, %v450
    %v452 = vpop.f32.mrf.mxu0
    %453 = vdwg.mxu0
    %454 = vmatpush.bf16.msra.mxu0 0
    %455 = vmatpush.bf16.msra.mxu0 0
    %456 = vmatpush.bf16.msra.mxu0 0
    %457 = vmatpush.bf16.msra.mxu0 0
    %458 = vmatpush.bf16.msra.mxu0 %v429
    %459 = vmatpush.bf16.msra.mxu0 %v427
    %460 = vmatpush.bf16.msra.mxu0 %v425
    %461 = vmatpush.bf16.msra.mxu0 %v423
    %462 = vmatmul.bf16.gmra.mxu0 %v439
    %v463 = vpop.f32.mrf.mxu0
    %v464 = vadd.f32 %v395, %v463
    %v465 = vpop.f32.mrf.mxu0
    %466 = vdwg.mxu0
    %v467 = vld [vmem:[%s4] sm:$0xff]
    %v468 = vld [vmem:[%s4 + $0x8] sm:$0xff]
    %v469 = vadd.f32 %v451, %v467
    %v470 = vadd.f32 %v464, %v468
    %471 = vmax.xlane.f32.xlu0 %v469
    %v472 = vpop.xlane.xlu0 %471
    %v473 = vsub.f32 %v469, %v472
    %v474 = vmul.f32 %v473, 1.442695
    %v475 = vpow.pop %v474
    %476 = vadd.xlane.f32.xlu0 %v475
    %v477 = vpop.xlane.xlu0 %476
    %v478 = vlog2.pop %v477
    %v479 = vmul.f32 %v478, 0.6931472
    %v480 = vsub.f32 %v473, %v479
    %s481 = scalar_lea.vmem [#allocation5], 8
    %482 = vst [vmem:[%s481] sm:$0xff] %v480
    %s483 = scalar_lea.vmem %s0, 8
    %v484 = vld [vmem:[%s483] sm:$0xf]
    %v485 = vld [vmem:[%s2] sm:$0xff]
    %v486 = vld [vmem:[%s2 + $0x8] sm:$0xff]
    %v487 = vld [vmem:[%s2 + $0x10] sm:$0xff]
    %v488 = vld [vmem:[%s2 + $0x18] sm:$0xff]
    %v489 = vld [vmem:[%s2 + $0x20] sm:$0xff]
    %v490 = vld [vmem:[%s2 + $0x28] sm:$0xff]
    %v491 = vld [vmem:[%s2 + $0x30] sm:$0xff]
    %v492 = vld [vmem:[%s2 + $0x38] sm:$0xff]
    %v493 = vpack.c.bf16 %v470, %v470
    %v494 = vld [vmem:[#allocation2] sm:$0xff]
    %v495 = vld [vmem:[#allocation2 + $0x8] sm:$0xff]
    %v496 = vld [vmem:[#allocation2 + $0x10] sm:$0xff]
    %v497 = vld [vmem:[#allocation2 + $0x18] sm:$0xff]
    %v498 = vld [vmem:[#allocation2 + $0x20] sm:$0xff]
    %v499 = vld [vmem:[#allocation2 + $0x28] sm:$0xff]
    %v500 = vld [vmem:[#allocation2 + $0x30] sm:$0xff]
    %v501 = vld [vmem:[#allocation2 + $0x38] sm:$0xff]
    %v502 = vld [vmem:[#allocation2 + $0x40] sm:$0xff]
    %v503 = vld [vmem:[#allocation2 + $0x48] sm:$0xff]
    %v504 = vld [vmem:[#allocation2 + $0x50] sm:$0xff]
    %v505 = vld [vmem:[#allocation2 + $0x58] sm:$0xff]
    %v506 = vld [vmem:[#allocation2 + $0x60] sm:$0xff]
    %v507 = vld [vmem:[#allocation2 + $0x68] sm:$0xff]
    %v508 = vld [vmem:[#allocation2 + $0x70] sm:$0xff]
    %v509 = vld [vmem:[#allocation2 + $0x78] sm:$0xff]
    %v526 = vunpack.c.l.b16 %v494
    %v527 = vunpack.c.h.b16 %v494
    %v528 = vunpack.c.l.b16 %v495
    %v529 = vunpack.c.h.b16 %v495
    %v530 = vunpack.c.l.b16 %v496
    %v531 = vunpack.c.h.b16 %v496
    %v532 = vunpack.c.l.b16 %v497
    %v533 = vunpack.c.h.b16 %v497
    %v534 = vunpack.c.l.b16 %v498
    %v535 = vunpack.c.h.b16 %v498
    %v536 = vunpack.c.l.b16 %v499
    %v537 = vunpack.c.h.b16 %v499
    %v538 = vunpack.c.l.b16 %v500
    %v539 = vunpack.c.h.b16 %v500
    %v540 = vunpack.c.l.b16 %v501
    %v541 = vunpack.c.h.b16 %v501
    %v542 = vunpack.c.l.b16 %v502
    %v543 = vunpack.c.h.b16 %v502
    %v544 = vunpack.c.l.b16 %v503
    %v545 = vunpack.c.h.b16 %v503
    %v546 = vunpack.c.l.b16 %v504
    %v547 = vunpack.c.h.b16 %v504
    %v548 = vunpack.c.l.b16 %v505
    %v549 = vunpack.c.h.b16 %v505
    %v550 = vunpack.c.l.b16 %v506
    %v551 = vunpack.c.h.b16 %v506
    %v552 = vunpack.c.l.b16 %v507
    %v553 = vunpack.c.h.b16 %v507
    %v554 = vunpack.c.l.b16 %v508
    %v555 = vunpack.c.h.b16 %v508
    %v556 = vunpack.c.l.b16 %v509
    %v557 = vunpack.c.h.b16 %v509
    %v558 = vpack.c.b16 %v528, %v526
    %v559 = vpack.c.b16 %v529, %v527
    %v560 = vpack.c.b16 %v532, %v530
    %v561 = vpack.c.b16 %v533, %v531
    %v562 = vpack.c.b16 %v536, %v534
    %v563 = vpack.c.b16 %v537, %v535
    %v564 = vpack.c.b16 %v540, %v538
    %v565 = vpack.c.b16 %v541, %v539
    %v566 = vpack.c.b16 %v544, %v542
    %v567 = vpack.c.b16 %v545, %v543
    %v568 = vpack.c.b16 %v548, %v546
    %v569 = vpack.c.b16 %v549, %v547
    %v570 = vpack.c.b16 %v552, %v550
    %v571 = vpack.c.b16 %v553, %v551
    %v572 = vpack.c.b16 %v556, %v554
    %v573 = vpack.c.b16 %v557, %v555
    %590 = vmatpush.bf16.msra.mxu0 %v572
    %591 = vmatpush.bf16.msra.mxu0 %v570
    %592 = vmatpush.bf16.msra.mxu0 %v568
    %593 = vmatpush.bf16.msra.mxu0 %v566
    %594 = vmatpush.bf16.msra.mxu0 %v564
    %595 = vmatpush.bf16.msra.mxu0 %v562
    %596 = vmatpush.bf16.msra.mxu0 %v560
    %597 = vmatpush.bf16.msra.mxu0 %v558
    %598 = vmatmul.bf16.gmra.mxu0 %v493
    %v599 = vpop.f32.mrf.mxu0
    %v600 = vadd.f32 0.0, %v599
    %v601 = vpop.f32.mrf.mxu0
    %602 = vdwg.mxu0
    %603 = vmatpush.bf16.msra.mxu0 %v573
    %604 = vmatpush.bf16.msra.mxu0 %v571
    %605 = vmatpush.bf16.msra.mxu0 %v569
    %606 = vmatpush.bf16.msra.mxu0 %v567
    %607 = vmatpush.bf16.msra.mxu0 %v565
    %608 = vmatpush.bf16.msra.mxu0 %v563
    %609 = vmatpush.bf16.msra.mxu0 %v561
    %610 = vmatpush.bf16.msra.mxu0 %v559
    %611 = vmatmul.bf16.gmra.mxu0 %v493
    %v612 = vpop.f32.mrf.mxu0
    %v613 = vadd.f32 0.0, %v612
    %v614 = vpop.f32.mrf.mxu0
    %615 = vdwg.mxu0
    %v624 = vunpack.c.l.b16 %v485
    %v625 = vunpack.c.h.b16 %v485
    %v626 = vunpack.c.l.b16 %v486
    %v627 = vunpack.c.h.b16 %v486
    %v628 = vunpack.c.l.b16 %v487
    %v629 = vunpack.c.h.b16 %v487
    %v630 = vunpack.c.l.b16 %v488
    %v631 = vunpack.c.h.b16 %v488
    %v632 = vunpack.c.l.b16 %v489
    %v633 = vunpack.c.h.b16 %v489
    %v634 = vunpack.c.l.b16 %v490
    %v635 = vunpack.c.h.b16 %v490
    %v636 = vunpack.c.l.b16 %v491
    %v637 = vunpack.c.h.b16 %v491
    %v638 = vunpack.c.l.b16 %v492
    %v639 = vunpack.c.h.b16 %v492
    %v640 = vpack.c.b16 %v626, %v624
    %v641 = vpack.c.b16 %v627, %v625
    %v642 = vpack.c.b16 %v630, %v628
    %v643 = vpack.c.b16 %v631, %v629
    %v644 = vpack.c.b16 %v634, %v632
    %v645 = vpack.c.b16 %v635, %v633
    %v646 = vpack.c.b16 %v638, %v636
    %v647 = vpack.c.b16 %v639, %v637
    %v657 = vsel %vm220, %v484, 0
    %659 = vmatpush.bf16.msra.mxu0 0
    %660 = vmatpush.bf16.msra.mxu0 0
    %661 = vmatpush.bf16.msra.mxu0 0
    %662 = vmatpush.bf16.msra.mxu0 0
    %663 = vmatpush.bf16.msra.mxu0 %v646
    %664 = vmatpush.bf16.msra.mxu0 %v644
    %665 = vmatpush.bf16.msra.mxu0 %v642
    %666 = vmatpush.bf16.msra.mxu0 %v640
    %667 = vmatmul.bf16.gmra.mxu0 %v657
    %v668 = vpop.f32.mrf.mxu0
    %v669 = vadd.f32 %v600, %v668
    %v670 = vpop.f32.mrf.mxu0
    %671 = vdwg.mxu0
    %672 = vmatpush.bf16.msra.mxu0 0
    %673 = vmatpush.bf16.msra.mxu0 0
    %674 = vmatpush.bf16.msra.mxu0 0
    %675 = vmatpush.bf16.msra.mxu0 0
    %676 = vmatpush.bf16.msra.mxu0 %v647
    %677 = vmatpush.bf16.msra.mxu0 %v645
    %678 = vmatpush.bf16.msra.mxu0 %v643
    %679 = vmatpush.bf16.msra.mxu0 %v641
    %680 = vmatmul.bf16.gmra.mxu0 %v657
    %v681 = vpop.f32.mrf.mxu0
    %v682 = vadd.f32 %v613, %v681
    %v683 = vpop.f32.mrf.mxu0
    %684 = vdwg.mxu0
    %v685 = vld [vmem:[%s4] sm:$0xff]
    %v686 = vld [vmem:[%s4 + $0x8] sm:$0xff]
    %v687 = vadd.f32 %v669, %v685
    %v688 = vadd.f32 %v682, %v686
    %689 = vmax.xlane.f32.xlu0 %v687
    %v690 = vpop.xlane.xlu0 %689
    %v691 = vsub.f32 %v687, %v690
    %v692 = vmul.f32 %v691, 1.442695
    %v693 = vpow.pop %v692
    %694 = vadd.xlane.f32.xlu0 %v693
    %v695 = vpop.xlane.xlu0 %694
    %v696 = vlog2.pop %v695
    %v697 = vmul.f32 %v696, 0.6931472
    %v698 = vsub.f32 %v691, %v697
    %s699 = scalar_lea.vmem [#allocation5], 16
    %700 = vst [vmem:[%s699] sm:$0xff] %v698
    %s701 = scalar_lea.vmem %s0, 12
    %v702 = vld [vmem:[%s701] sm:$0xf]
    %v703 = vld [vmem:[%s2] sm:$0xff]
    %v704 = vld [vmem:[%s2 + $0x8] sm:$0xff]
    %v705 = vld [vmem:[%s2 + $0x10] sm:$0xff]
    %v706 = vld [vmem:[%s2 + $0x18] sm:$0xff]
    %v707 = vld [vmem:[%s2 + $0x20] sm:$0xff]
    %v708 = vld [vmem:[%s2 + $0x28] sm:$0xff]
    %v709 = vld [vmem:[%s2 + $0x30] sm:$0xff]
    %v710 = vld [vmem:[%s2 + $0x38] sm:$0xff]
    %v711 = vpack.c.bf16 %v688, %v688
    %v712 = vld [vmem:[#allocation2] sm:$0xff]
    %v713 = vld [vmem:[#allocation2 + $0x8] sm:$0xff]
    %v714 = vld [vmem:[#allocation2 + $0x10] sm:$0xff]
    %v715 = vld [vmem:[#allocation2 + $0x18] sm:$0xff]
    %v716 = vld [vmem:[#allocation2 + $0x20] sm:$0xff]
    %v717 = vld [vmem:[#allocation2 + $0x28] sm:$0xff]
    %v718 = vld [vmem:[#allocation2 + $0x30] sm:$0xff]
    %v719 = vld [vmem:[#allocation2 + $0x38] sm:$0xff]
    %v720 = vld [vmem:[#allocation2 + $0x40] sm:$0xff]
    %v721 = vld [vmem:[#allocation2 + $0x48] sm:$0xff]
    %v722 = vld [vmem:[#allocation2 + $0x50] sm:$0xff]
    %v723 = vld [vmem:[#allocation2 + $0x58] sm:$0xff]
    %v724 = vld [vmem:[#allocation2 + $0x60] sm:$0xff]
    %v725 = vld [vmem:[#allocation2 + $0x68] sm:$0xff]
    %v726 = vld [vmem:[#allocation2 + $0x70] sm:$0xff]
    %v727 = vld [vmem:[#allocation2 + $0x78] sm:$0xff]
    %v744 = vunpack.c.l.b16 %v712
    %v745 = vunpack.c.h.b16 %v712
    %v746 = vunpack.c.l.b16 %v713
    %v747 = vunpack.c.h.b16 %v713
    %v748 = vunpack.c.l.b16 %v714
    %v749 = vunpack.c.h.b16 %v714
    %v750 = vunpack.c.l.b16 %v715
    %v751 = vunpack.c.h.b16 %v715
    %v752 = vunpack.c.l.b16 %v716
    %v753 = vunpack.c.h.b16 %v716
    %v754 = vunpack.c.l.b16 %v717
    %v755 = vunpack.c.h.b16 %v717
    %v756 = vunpack.c.l.b16 %v718
    %v757 = vunpack.c.h.b16 %v718
    %v758 = vunpack.c.l.b16 %v719
    %v759 = vunpack.c.h.b16 %v719
    %v760 = vunpack.c.l.b16 %v720
    %v761 = vunpack.c.h.b16 %v720
    %v762 = vunpack.c.l.b16 %v721
    %v763 = vunpack.c.h.b16 %v721
    %v764 = vunpack.c.l.b16 %v722
    %v765 = vunpack.c.h.b16 %v722
    %v766 = vunpack.c.l.b16 %v723
    %v767 = vunpack.c.h.b16 %v723
    %v768 = vunpack.c.l.b16 %v724
    %v769 = vunpack.c.h.b16 %v724
    %v770 = vunpack.c.l.b16 %v725
    %v771 = vunpack.c.h.b16 %v725
    %v772 = vunpack.c.l.b16 %v726
    %v773 = vunpack.c.h.b16 %v726
    %v774 = vunpack.c.l.b16 %v727
    %v775 = vunpack.c.h.b16 %v727
    %v776 = vpack.c.b16 %v746, %v744
    %v777 = vpack.c.b16 %v747, %v745
    %v778 = vpack.c.b16 %v750, %v748
    %v779 = vpack.c.b16 %v751, %v749
    %v780 = vpack.c.b16 %v754, %v752
    %v781 = vpack.c.b16 %v755, %v753
    %v782 = vpack.c.b16 %v758, %v756
    %v783 = vpack.c.b16 %v759, %v757
    %v784 = vpack.c.b16 %v762, %v760
    %v785 = vpack.c.b16 %v763, %v761
    %v786 = vpack.c.b16 %v766, %v764
    %v787 = vpack.c.b16 %v767, %v765
    %v788 = vpack.c.b16 %v770, %v768
    %v789 = vpack.c.b16 %v771, %v769
    %v790 = vpack.c.b16 %v774, %v772
    %v791 = vpack.c.b16 %v775, %v773
    %808 = vmatpush.bf16.msra.mxu0 %v790
    %809 = vmatpush.bf16.msra.mxu0 %v788
    %810 = vmatpush.bf16.msra.mxu0 %v786
    %811 = vmatpush.bf16.msra.mxu0 %v784
    %812 = vmatpush.bf16.msra.mxu0 %v782
    %813 = vmatpush.bf16.msra.mxu0 %v780
    %814 = vmatpush.bf16.msra.mxu0 %v778
    %815 = vmatpush.bf16.msra.mxu0 %v776
    %816 = vmatmul.bf16.gmra.mxu0 %v711
    %v817 = vpop.f32.mrf.mxu0
    %v818 = vadd.f32 0.0, %v817
    %v819 = vpop.f32.mrf.mxu0
    %820 = vdwg.mxu0
    %821 = vmatpush.bf16.msra.mxu0 %v791
    %822 = vmatpush.bf16.msra.mxu0 %v789
    %823 = vmatpush.bf16.msra.mxu0 %v787
    %824 = vmatpush.bf16.msra.mxu0 %v785
    %825 = vmatpush.bf16.msra.mxu0 %v783
    %826 = vmatpush.bf16.msra.mxu0 %v781
    %827 = vmatpush.bf16.msra.mxu0 %v779
    %828 = vmatpush.bf16.msra.mxu0 %v777
    %829 = vmatmul.bf16.gmra.mxu0 %v711
    %v830 = vpop.f32.mrf.mxu0
    %v831 = vadd.f32 0.0, %v830
    %v832 = vpop.f32.mrf.mxu0
    %833 = vdwg.mxu0
    %v842 = vunpack.c.l.b16 %v703
    %v843 = vunpack.c.h.b16 %v703
    %v844 = vunpack.c.l.b16 %v704
    %v845 = vunpack.c.h.b16 %v704
    %v846 = vunpack.c.l.b16 %v705
    %v847 = vunpack.c.h.b16 %v705
    %v848 = vunpack.c.l.b16 %v706
    %v849 = vunpack.c.h.b16 %v706
    %v850 = vunpack.c.l.b16 %v707
    %v851 = vunpack.c.h.b16 %v707
    %v852 = vunpack.c.l.b16 %v708
    %v853 = vunpack.c.h.b16 %v708
    %v854 = vunpack.c.l.b16 %v709
    %v855 = vunpack.c.h.b16 %v709
    %v856 = vunpack.c.l.b16 %v710
    %v857 = vunpack.c.h.b16 %v710
    %v858 = vpack.c.b16 %v844, %v842
    %v859 = vpack.c.b16 %v845, %v843
    %v860 = vpack.c.b16 %v848, %v846
    %v861 = vpack.c.b16 %v849, %v847
    %v862 = vpack.c.b16 %v852, %v850
    %v863 = vpack.c.b16 %v853, %v851
    %v864 = vpack.c.b16 %v856, %v854
    %v865 = vpack.c.b16 %v857, %v855
    %v875 = vsel %vm220, %v702, 0
    %877 = vmatpush.bf16.msra.mxu0 0
    %878 = vmatpush.bf16.msra.mxu0 0
    %879 = vmatpush.bf16.msra.mxu0 0
    %880 = vmatpush.bf16.msra.mxu0 0
    %881 = vmatpush.bf16.msra.mxu0 %v864
    %882 = vmatpush.bf16.msra.mxu0 %v862
    %883 = vmatpush.bf16.msra.mxu0 %v860
    %884 = vmatpush.bf16.msra.mxu0 %v858
    %885 = vmatmul.bf16.gmra.mxu0 %v875
    %v886 = vpop.f32.mrf.mxu0
    %v887 = vadd.f32 %v818, %v886
    %v888 = vpop.f32.mrf.mxu0
    %889 = vdwg.mxu0
    %890 = vmatpush.bf16.msra.mxu0 0
    %891 = vmatpush.bf16.msra.mxu0 0
    %892 = vmatpush.bf16.msra.mxu0 0
    %893 = vmatpush.bf16.msra.mxu0 0
    %894 = vmatpush.bf16.msra.mxu0 %v865
    %895 = vmatpush.bf16.msra.mxu0 %v863
    %896 = vmatpush.bf16.msra.mxu0 %v861
    %897 = vmatpush.bf16.msra.mxu0 %v859
    %898 = vmatmul.bf16.gmra.mxu0 %v875
    %v899 = vpop.f32.mrf.mxu0
    %v900 = vadd.f32 %v831, %v899
    %v901 = vpop.f32.mrf.mxu0
    %902 = vdwg.mxu0
    %v903 = vld [vmem:[%s4] sm:$0xff]
    %v904 = vld [vmem:[%s4 + $0x8] sm:$0xff]
    %v905 = vadd.f32 %v887, %v903
    %v906 = vadd.f32 %v900, %v904
    %907 = vmax.xlane.f32.xlu0 %v905
    %v908 = vpop.xlane.xlu0 %907
    %v909 = vsub.f32 %v905, %v908
    %v910 = vmul.f32 %v909, 1.442695
    %v911 = vpow.pop %v910
    %912 = vadd.xlane.f32.xlu0 %v911
    %v913 = vpop.xlane.xlu0 %912
    %v914 = vlog2.pop %v913
    %v915 = vmul.f32 %v914, 0.6931472
    %v916 = vsub.f32 %v909, %v915
    %s917 = scalar_lea.vmem [#allocation5], 24
    %918 = vst [vmem:[%s917] sm:$0xff] %v916
    %s919 = scalar_lea.vmem %s0, 16
    %v920 = vld [vmem:[%s919] sm:$0xf]
    %v921 = vld [vmem:[%s2] sm:$0xff]
    %v922 = vld [vmem:[%s2 + $0x8] sm:$0xff]
    %v923 = vld [vmem:[%s2 + $0x10] sm:$0xff]
    %v924 = vld [vmem:[%s2 + $0x18] sm:$0xff]
    %v925 = vld [vmem:[%s2 + $0x20] sm:$0xff]
    %v926 = vld [vmem:[%s2 + $0x28] sm:$0xff]
    %v927 = vld [vmem:[%s2 + $0x30] sm:$0xff]
    %v928 = vld [vmem:[%s2 + $0x38] sm:$0xff]
    %v929 = vpack.c.bf16 %v906, %v906
    %v930 = vld [vmem:[#allocation2] sm:$0xff]
    %v931 = vld [vmem:[#allocation2 + $0x8] sm:$0xff]
    %v932 = vld [vmem:[#allocation2 + $0x10] sm:$0xff]
    %v933 = vld [vmem:[#allocation2 + $0x18] sm:$0xff]
    %v934 = vld [vmem:[#allocation2 + $0x20] sm:$0xff]
    %v935 = vld [vmem:[#allocation2 + $0x28] sm:$0xff]
    %v936 = vld [vmem:[#allocation2 + $0x30] sm:$0xff]
    %v937 = vld [vmem:[#allocation2 + $0x38] sm:$0xff]
    %v938 = vld [vmem:[#allocation2 + $0x40] sm:$0xff]
    %v939 = vld [vmem:[#allocation2 + $0x48] sm:$0xff]
    %v940 = vld [vmem:[#allocation2 + $0x50] sm:$0xff]
    %v941 = vld [vmem:[#allocation2 + $0x58] sm:$0xff]
    %v942 = vld [vmem:[#allocation2 + $0x60] sm:$0xff]
    %v943 = vld [vmem:[#allocation2 + $0x68] sm:$0xff]
    %v944 = vld [vmem:[#allocation2 + $0x70] sm:$0xff]
    %v945 = vld [vmem:[#allocation2 + $0x78] sm:$0xff]
    %v962 = vunpack.c.l.b16 %v930
    %v963 = vunpack.c.h.b16 %v930
    %v964 = vunpack.c.l.b16 %v931
    %v965 = vunpack.c.h.b16 %v931
    %v966 = vunpack.c.l.b16 %v932
    %v967 = vunpack.c.h.b16 %v932
    %v968 = vunpack.c.l.b16 %v933
    %v969 = vunpack.c.h.b16 %v933
    %v970 = vunpack.c.l.b16 %v934
    %v971 = vunpack.c.h.b16 %v934
    %v972 = vunpack.c.l.b16 %v935
    %v973 = vunpack.c.h.b16 %v935
    %v974 = vunpack.c.l.b16 %v936
    %v975 = vunpack.c.h.b16 %v936
    %v976 = vunpack.c.l.b16 %v937
    %v977 = vunpack.c.h.b16 %v937
    %v978 = vunpack.c.l.b16 %v938
    %v979 = vunpack.c.h.b16 %v938
    %v980 = vunpack.c.l.b16 %v939
    %v981 = vunpack.c.h.b16 %v939
    %v982 = vunpack.c.l.b16 %v940
    %v983 = vunpack.c.h.b16 %v940
    %v984 = vunpack.c.l.b16 %v941
    %v985 = vunpack.c.h.b16 %v941
    %v986 = vunpack.c.l.b16 %v942
    %v987 = vunpack.c.h.b16 %v942
    %v988 = vunpack.c.l.b16 %v943
    %v989 = vunpack.c.h.b16 %v943
    %v990 = vunpack.c.l.b16 %v944
    %v991 = vunpack.c.h.b16 %v944
    %v992 = vunpack.c.l.b16 %v945
    %v993 = vunpack.c.h.b16 %v945
    %v994 = vpack.c.b16 %v964, %v962
    %v995 = vpack.c.b16 %v965, %v963
    %v996 = vpack.c.b16 %v968, %v966
    %v997 = vpack.c.b16 %v969, %v967
    %v998 = vpack.c.b16 %v972, %v970
    %v999 = vpack.c.b16 %v973, %v971
    %v1000 = vpack.c.b16 %v976, %v974
    %v1001 = vpack.c.b16 %v977, %v975
    %v1002 = vpack.c.b16 %v980, %v978
    %v1003 = vpack.c.b16 %v981, %v979
    %v1004 = vpack.c.b16 %v984, %v982
    %v1005 = vpack.c.b16 %v985, %v983
    %v1006 = vpack.c.b16 %v988, %v986
    %v1007 = vpack.c.b16 %v989, %v987
    %v1008 = vpack.c.b16 %v992, %v990
    %v1009 = vpack.c.b16 %v993, %v991
    %1026 = vmatpush.bf16.msra.mxu0 %v1008
    %1027 = vmatpush.bf16.msra.mxu0 %v1006
    %1028 = vmatpush.bf16.msra.mxu0 %v1004
    %1029 = vmatpush.bf16.msra.mxu0 %v1002
    %1030 = vmatpush.bf16.msra.mxu0 %v1000
    %1031 = vmatpush.bf16.msra.mxu0 %v998
    %1032 = vmatpush.bf16.msra.mxu0 %v996
    %1033 = vmatpush.bf16.msra.mxu0 %v994
    %1034 = vmatmul.bf16.gmra.mxu0 %v929
    %v1035 = vpop.f32.mrf.mxu0
    %v1036 = vadd.f32 0.0, %v1035
    %v1037 = vpop.f32.mrf.mxu0
    %1038 = vdwg.mxu0
    %1039 = vmatpush.bf16.msra.mxu0 %v1009
    %1040 = vmatpush.bf16.msra.mxu0 %v1007
    %1041 = vmatpush.bf16.msra.mxu0 %v1005
    %1042 = vmatpush.bf16.msra.mxu0 %v1003
    %1043 = vmatpush.bf16.msra.mxu0 %v1001
    %1044 = vmatpush.bf16.msra.mxu0 %v999
    %1045 = vmatpush.bf16.msra.mxu0 %v997
    %1046 = vmatpush.bf16.msra.mxu0 %v995
    %1047 = vmatmul.bf16.gmra.mxu0 %v929
    %v1048 = vpop.f32.mrf.mxu0
    %v1049 = vadd.f32 0.0, %v1048
    %v1050 = vpop.f32.mrf.mxu0
    %1051 = vdwg.mxu0
    %v1060 = vunpack.c.l.b16 %v921
    %v1061 = vunpack.c.h.b16 %v921
    %v1062 = vunpack.c.l.b16 %v922
    %v1063 = vunpack.c.h.b16 %v922
    %v1064 = vunpack.c.l.b16 %v923
    %v1065 = vunpack.c.h.b16 %v923
    %v1066 = vunpack.c.l.b16 %v924
    %v1067 = vunpack.c.h.b16 %v924
    %v1068 = vunpack.c.l.b16 %v925
    %v1069 = vunpack.c.h.b16 %v925
    %v1070 = vunpack.c.l.b16 %v926
    %v1071 = vunpack.c.h.b16 %v926
    %v1072 = vunpack.c.l.b16 %v927
    %v1073 = vunpack.c.h.b16 %v927
    %v1074 = vunpack.c.l.b16 %v928
    %v1075 = vunpack.c.h.b16 %v928
    %v1076 = vpack.c.b16 %v1062, %v1060
    %v1077 = vpack.c.b16 %v1063, %v1061
    %v1078 = vpack.c.b16 %v1066, %v1064
    %v1079 = vpack.c.b16 %v1067, %v1065
    %v1080 = vpack.c.b16 %v1070, %v1068
    %v1081 = vpack.c.b16 %v1071, %v1069
    %v1082 = vpack.c.b16 %v1074, %v1072
    %v1083 = vpack.c.b16 %v1075, %v1073
    %v1093 = vsel %vm220, %v920, 0
    %1095 = vmatpush.bf16.msra.mxu0 0
    %1096 = vmatpush.bf16.msra.mxu0 0
    %1097 = vmatpush.bf16.msra.mxu0 0
    %1098 = vmatpush.bf16.msra.mxu0 0
    %1099 = vmatpush.bf16.msra.mxu0 %v1082
    %1100 = vmatpush.bf16.msra.mxu0 %v1080
    %1101 = vmatpush.bf16.msra.mxu0 %v1078
    %1102 = vmatpush.bf16.msra.mxu0 %v1076
    %1103 = vmatmul.bf16.gmra.mxu0 %v1093
    %v1104 = vpop.f32.mrf.mxu0
    %v1105 = vadd.f32 %v1036, %v1104
    %v1106 = vpop.f32.mrf.mxu0
    %1107 = vdwg.mxu0
    %1108 = vmatpush.bf16.msra.mxu0 0
    %1109 = vmatpush.bf16.msra.mxu0 0
    %1110 = vmatpush.bf16.msra.mxu0 0
    %1111 = vmatpush.bf16.msra.mxu0 0
    %1112 = vmatpush.bf16.msra.mxu0 %v1083
    %1113 = vmatpush.bf16.msra.mxu0 %v1081
    %1114 = vmatpush.bf16.msra.mxu0 %v1079
    %1115 = vmatpush.bf16.msra.mxu0 %v1077
    %1116 = vmatmul.bf16.gmra.mxu0 %v1093
    %v1117 = vpop.f32.mrf.mxu0
    %v1118 = vadd.f32 %v1049, %v1117
    %v1119 = vpop.f32.mrf.mxu0
    %1120 = vdwg.mxu0
    %v1121 = vld [vmem:[%s4] sm:$0xff]
    %v1122 = vld [vmem:[%s4 + $0x8] sm:$0xff]
    %v1123 = vadd.f32 %v1105, %v1121
    %v1124 = vadd.f32 %v1118, %v1122
    %1125 = vmax.xlane.f32.xlu0 %v1123
    %v1126 = vpop.xlane.xlu0 %1125
    %v1127 = vsub.f32 %v1123, %v1126
    %v1128 = vmul.f32 %v1127, 1.442695
    %v1129 = vpow.pop %v1128
    %1130 = vadd.xlane.f32.xlu0 %v1129
    %v1131 = vpop.xlane.xlu0 %1130
    %v1132 = vlog2.pop %v1131
    %v1133 = vmul.f32 %v1132, 0.6931472
    %v1134 = vsub.f32 %v1127, %v1133
    %s1135 = scalar_lea.vmem [#allocation5], 32
    %1136 = vst [vmem:[%s1135] sm:$0xff] %v1134
    %s1137 = scalar_lea.vmem %s0, 20
    %v1138 = vld [vmem:[%s1137] sm:$0xf]
    %v1139 = vld [vmem:[%s2] sm:$0xff]
    %v1140 = vld [vmem:[%s2 + $0x8] sm:$0xff]
    %v1141 = vld [vmem:[%s2 + $0x10] sm:$0xff]
    %v1142 = vld [vmem:[%s2 + $0x18] sm:$0xff]
    %v1143 = vld [vmem:[%s2 + $0x20] sm:$0xff]
    %v1144 = vld [vmem:[%s2 + $0x28] sm:$0xff]
    %v1145 = vld [vmem:[%s2 + $0x30] sm:$0xff]
    %v1146 = vld [vmem:[%s2 + $0x38] sm:$0xff]
    %v1147 = vpack.c.bf16 %v1124, %v1124
    %v1148 = vld [vmem:[#allocation2] sm:$0xff]
    %v1149 = vld [vmem:[#allocation2 + $0x8] sm:$0xff]
    %v1150 = vld [vmem:[#allocation2 + $0x10] sm:$0xff]
    %v1151 = vld [vmem:[#allocation2 + $0x18] sm:$0xff]
    %v1152 = vld [vmem:[#allocation2 + $0x20] sm:$0xff]
    %v1153 = vld [vmem:[#allocation2 + $0x28] sm:$0xff]
    %v1154 = vld [vmem:[#allocation2 + $0x30] sm:$0xff]
    %v1155 = vld [vmem:[#allocation2 + $0x38] sm:$0xff]
    %v1156 = vld [vmem:[#allocation2 + $0x40] sm:$0xff]
    %v1157 = vld [vmem:[#allocation2 + $0x48] sm:$0xff]
    %v1158 = vld [vmem:[#allocation2 + $0x50] sm:$0xff]
    %v1159 = vld [vmem:[#allocation2 + $0x58] sm:$0xff]
    %v1160 = vld [vmem:[#allocation2 + $0x60] sm:$0xff]
    %v1161 = vld [vmem:[#allocation2 + $0x68] sm:$0xff]
    %v1162 = vld [vmem:[#allocation2 + $0x70] sm:$0xff]
    %v1163 = vld [vmem:[#allocation2 + $0x78] sm:$0xff]
    %v1180 = vunpack.c.l.b16 %v1148
    %v1181 = vunpack.c.h.b16 %v1148
    %v1182 = vunpack.c.l.b16 %v1149
    %v1183 = vunpack.c.h.b16 %v1149
    %v1184 = vunpack.c.l.b16 %v1150
    %v1185 = vunpack.c.h.b16 %v1150
    %v1186 = vunpack.c.l.b16 %v1151
    %v1187 = vunpack.c.h.b16 %v1151
    %v1188 = vunpack.c.l.b16 %v1152
    %v1189 = vunpack.c.h.b16 %v1152
    %v1190 = vunpack.c.l.b16 %v1153
    %v1191 = vunpack.c.h.b16 %v1153
    %v1192 = vunpack.c.l.b16 %v1154
    %v1193 = vunpack.c.h.b16 %v1154
    %v1194 = vunpack.c.l.b16 %v1155
    %v1195 = vunpack.c.h.b16 %v1155
    %v1196 = vunpack.c.l.b16 %v1156
    %v1197 = vunpack.c.h.b16 %v1156
    %v1198 = vunpack.c.l.b16 %v1157
    %v1199 = vunpack.c.h.b16 %v1157
    %v1200 = vunpack.c.l.b16 %v1158
    %v1201 = vunpack.c.h.b16 %v1158
    %v1202 = vunpack.c.l.b16 %v1159
    %v1203 = vunpack.c.h.b16 %v1159
    %v1204 = vunpack.c.l.b16 %v1160
    %v1205 = vunpack.c.h.b16 %v1160
    %v1206 = vunpack.c.l.b16 %v1161
    %v1207 = vunpack.c.h.b16 %v1161
    %v1208 = vunpack.c.l.b16 %v1162
    %v1209 = vunpack.c.h.b16 %v1162
    %v1210 = vunpack.c.l.b16 %v1163
    %v1211 = vunpack.c.h.b16 %v1163
    %v1212 = vpack.c.b16 %v1182, %v1180
    %v1213 = vpack.c.b16 %v1183, %v1181
    %v1214 = vpack.c.b16 %v1186, %v1184
    %v1215 = vpack.c.b16 %v1187, %v1185
    %v1216 = vpack.c.b16 %v1190, %v1188
    %v1217 = vpack.c.b16 %v1191, %v1189
    %v1218 = vpack.c.b16 %v1194, %v1192
    %v1219 = vpack.c.b16 %v1195, %v1193
    %v1220 = vpack.c.b16 %v1198, %v1196
    %v1221 = vpack.c.b16 %v1199, %v1197
    %v1222 = vpack.c.b16 %v1202, %v1200
    %v1223 = vpack.c.b16 %v1203, %v1201
    %v1224 = vpack.c.b16 %v1206, %v1204
    %v1225 = vpack.c.b16 %v1207, %v1205
    %v1226 = vpack.c.b16 %v1210, %v1208
    %v1227 = vpack.c.b16 %v1211, %v1209
    %1244 = vmatpush.bf16.msra.mxu0 %v1226
    %1245 = vmatpush.bf16.msra.mxu0 %v1224
    %1246 = vmatpush.bf16.msra.mxu0 %v1222
    %1247 = vmatpush.bf16.msra.mxu0 %v1220
    %1248 = vmatpush.bf16.msra.mxu0 %v1218
    %1249 = vmatpush.bf16.msra.mxu0 %v1216
    %1250 = vmatpush.bf16.msra.mxu0 %v1214
    %1251 = vmatpush.bf16.msra.mxu0 %v1212
    %1252 = vmatmul.bf16.gmra.mxu0 %v1147
    %v1253 = vpop.f32.mrf.mxu0
    %v1254 = vadd.f32 0.0, %v1253
    %v1255 = vpop.f32.mrf.mxu0
    %1256 = vdwg.mxu0
    %1257 = vmatpush.bf16.msra.mxu0 %v1227
    %1258 = vmatpush.bf16.msra.mxu0 %v1225
    %1259 = vmatpush.bf16.msra.mxu0 %v1223
    %1260 = vmatpush.bf16.msra.mxu0 %v1221
    %1261 = vmatpush.bf16.msra.mxu0 %v1219
    %1262 = vmatpush.bf16.msra.mxu0 %v1217
    %1263 = vmatpush.bf16.msra.mxu0 %v1215
    %1264 = vmatpush.bf16.msra.mxu0 %v1213
    %1265 = vmatmul.bf16.gmra.mxu0 %v1147
    %v1266 = vpop.f32.mrf.mxu0
    %v1267 = vadd.f32 0.0, %v1266
    %v1268 = vpop.f32.mrf.mxu0
    %1269 = vdwg.mxu0
    %v1278 = vunpack.c.l.b16 %v1139
    %v1279 = vunpack.c.h.b16 %v1139
    %v1280 = vunpack.c.l.b16 %v1140
    %v1281 = vunpack.c.h.b16 %v1140
    %v1282 = vunpack.c.l.b16 %v1141
    %v1283 = vunpack.c.h.b16 %v1141
    %v1284 = vunpack.c.l.b16 %v1142
    %v1285 = vunpack.c.h.b16 %v1142
    %v1286 = vunpack.c.l.b16 %v1143
    %v1287 = vunpack.c.h.b16 %v1143
    %v1288 = vunpack.c.l.b16 %v1144
    %v1289 = vunpack.c.h.b16 %v1144
    %v1290 = vunpack.c.l.b16 %v1145
    %v1291 = vunpack.c.h.b16 %v1145
    %v1292 = vunpack.c.l.b16 %v1146
    %v1293 = vunpack.c.h.b16 %v1146
    %v1294 = vpack.c.b16 %v1280, %v1278
    %v1295 = vpack.c.b16 %v1281, %v1279
    %v1296 = vpack.c.b16 %v1284, %v1282
    %v1297 = vpack.c.b16 %v1285, %v1283
    %v1298 = vpack.c.b16 %v1288, %v1286
    %v1299 = vpack.c.b16 %v1289, %v1287
    %v1300 = vpack.c.b16 %v1292, %v1290
    %v1301 = vpack.c.b16 %v1293, %v1291
    %v1311 = vsel %vm220, %v1138, 0
    %1313 = vmatpush.bf16.msra.mxu0 0
    %1314 = vmatpush.bf16.msra.mxu0 0
    %1315 = vmatpush.bf16.msra.mxu0 0
    %1316 = vmatpush.bf16.msra.mxu0 0
    %1317 = vmatpush.bf16.msra.mxu0 %v1300
    %1318 = vmatpush.bf16.msra.mxu0 %v1298
    %1319 = vmatpush.bf16.msra.mxu0 %v1296
    %1320 = vmatpush.bf16.msra.mxu0 %v1294
    %1321 = vmatmul.bf16.gmra.mxu0 %v1311
    %v1322 = vpop.f32.mrf.mxu0
    %v1323 = vadd.f32 %v1254, %v1322
    %v1324 = vpop.f32.mrf.mxu0
    %1325 = vdwg.mxu0
    %1326 = vmatpush.bf16.msra.mxu0 0
    %1327 = vmatpush.bf16.msra.mxu0 0
    %1328 = vmatpush.bf16.msra.mxu0 0
    %1329 = vmatpush.bf16.msra.mxu0 0
    %1330 = vmatpush.bf16.msra.mxu0 %v1301
    %1331 = vmatpush.bf16.msra.mxu0 %v1299
    %1332 = vmatpush.bf16.msra.mxu0 %v1297
    %1333 = vmatpush.bf16.msra.mxu0 %v1295
    %1334 = vmatmul.bf16.gmra.mxu0 %v1311
    %v1335 = vpop.f32.mrf.mxu0
    %v1336 = vadd.f32 %v1267, %v1335
    %v1337 = vpop.f32.mrf.mxu0
    %1338 = vdwg.mxu0
    %v1339 = vld [vmem:[%s4] sm:$0xff]
    %v1340 = vld [vmem:[%s4 + $0x8] sm:$0xff]
    %v1341 = vadd.f32 %v1323, %v1339
    %v1342 = vadd.f32 %v1336, %v1340
    %1343 = vmax.xlane.f32.xlu0 %v1341
    %v1344 = vpop.xlane.xlu0 %1343
    %v1345 = vsub.f32 %v1341, %v1344
    %v1346 = vmul.f32 %v1345, 1.442695
    %v1347 = vpow.pop %v1346
    %1348 = vadd.xlane.f32.xlu0 %v1347
    %v1349 = vpop.xlane.xlu0 %1348
    %v1350 = vlog2.pop %v1349
    %v1351 = vmul.f32 %v1350, 0.6931472
    %v1352 = vsub.f32 %v1345, %v1351
    %s1353 = scalar_lea.vmem [#allocation5], 40
    %1354 = vst [vmem:[%s1353] sm:$0xff] %v1352
    %s1355 = scalar_lea.vmem %s0, 24
    %v1356 = vld [vmem:[%s1355] sm:$0xf]
    %v1357 = vld [vmem:[%s2] sm:$0xff]
    %v1358 = vld [vmem:[%s2 + $0x8] sm:$0xff]
    %v1359 = vld [vmem:[%s2 + $0x10] sm:$0xff]
    %v1360 = vld [vmem:[%s2 + $0x18] sm:$0xff]
    %v1361 = vld [vmem:[%s2 + $0x20] sm:$0xff]
    %v1362 = vld [vmem:[%s2 + $0x28] sm:$0xff]
    %v1363 = vld [vmem:[%s2 + $0x30] sm:$0xff]
    %v1364 = vld [vmem:[%s2 + $0x38] sm:$0xff]
    %v1365 = vpack.c.bf16 %v1342, %v1342
    %v1366 = vld [vmem:[#allocation2] sm:$0xff]
    %v1367 = vld [vmem:[#allocation2 + $0x8] sm:$0xff]
    %v1368 = vld [vmem:[#allocation2 + $0x10] sm:$0xff]
    %v1369 = vld [vmem:[#allocation2 + $0x18] sm:$0xff]
    %v1370 = vld [vmem:[#allocation2 + $0x20] sm:$0xff]
    %v1371 = vld [vmem:[#allocation2 + $0x28] sm:$0xff]
    %v1372 = vld [vmem:[#allocation2 + $0x30] sm:$0xff]
    %v1373 = vld [vmem:[#allocation2 + $0x38] sm:$0xff]
    %v1374 = vld [vmem:[#allocation2 + $0x40] sm:$0xff]
    %v1375 = vld [vmem:[#allocation2 + $0x48] sm:$0xff]
    %v1376 = vld [vmem:[#allocation2 + $0x50] sm:$0xff]
    %v1377 = vld [vmem:[#allocation2 + $0x58] sm:$0xff]
    %v1378 = vld [vmem:[#allocation2 + $0x60] sm:$0xff]
    %v1379 = vld [vmem:[#allocation2 + $0x68] sm:$0xff]
    %v1380 = vld [vmem:[#allocation2 + $0x70] sm:$0xff]
    %v1381 = vld [vmem:[#allocation2 + $0x78] sm:$0xff]
    %v1398 = vunpack.c.l.b16 %v1366
    %v1399 = vunpack.c.h.b16 %v1366
    %v1400 = vunpack.c.l.b16 %v1367
    %v1401 = vunpack.c.h.b16 %v1367
    %v1402 = vunpack.c.l.b16 %v1368
    %v1403 = vunpack.c.h.b16 %v1368
    %v1404 = vunpack.c.l.b16 %v1369
    %v1405 = vunpack.c.h.b16 %v1369
    %v1406 = vunpack.c.l.b16 %v1370
    %v1407 = vunpack.c.h.b16 %v1370
    %v1408 = vunpack.c.l.b16 %v1371
    %v1409 = vunpack.c.h.b16 %v1371
    %v1410 = vunpack.c.l.b16 %v1372
    %v1411 = vunpack.c.h.b16 %v1372
    %v1412 = vunpack.c.l.b16 %v1373
    %v1413 = vunpack.c.h.b16 %v1373
    %v1414 = vunpack.c.l.b16 %v1374
    %v1415 = vunpack.c.h.b16 %v1374
    %v1416 = vunpack.c.l.b16 %v1375
    %v1417 = vunpack.c.h.b16 %v1375
    %v1418 = vunpack.c.l.b16 %v1376
    %v1419 = vunpack.c.h.b16 %v1376
    %v1420 = vunpack.c.l.b16 %v1377
    %v1421 = vunpack.c.h.b16 %v1377
    %v1422 = vunpack.c.l.b16 %v1378
    %v1423 = vunpack.c.h.b16 %v1378
    %v1424 = vunpack.c.l.b16 %v1379
    %v1425 = vunpack.c.h.b16 %v1379
    %v1426 = vunpack.c.l.b16 %v1380
    %v1427 = vunpack.c.h.b16 %v1380
    %v1428 = vunpack.c.l.b16 %v1381
    %v1429 = vunpack.c.h.b16 %v1381
    %v1430 = vpack.c.b16 %v1400, %v1398
    %v1431 = vpack.c.b16 %v1401, %v1399
    %v1432 = vpack.c.b16 %v1404, %v1402
    %v1433 = vpack.c.b16 %v1405, %v1403
    %v1434 = vpack.c.b16 %v1408, %v1406
    %v1435 = vpack.c.b16 %v1409, %v1407
    %v1436 = vpack.c.b16 %v1412, %v1410
    %v1437 = vpack.c.b16 %v1413, %v1411
    %v1438 = vpack.c.b16 %v1416, %v1414
    %v1439 = vpack.c.b16 %v1417, %v1415
    %v1440 = vpack.c.b16 %v1420, %v1418
    %v1441 = vpack.c.b16 %v1421, %v1419
    %v1442 = vpack.c.b16 %v1424, %v1422
    %v1443 = vpack.c.b16 %v1425, %v1423
    %v1444 = vpack.c.b16 %v1428, %v1426
    %v1445 = vpack.c.b16 %v1429, %v1427
    %1462 = vmatpush.bf16.msra.mxu0 %v1444
    %1463 = vmatpush.bf16.msra.mxu0 %v1442
    %1464 = vmatpush.bf16.msra.mxu0 %v1440
    %1465 = vmatpush.bf16.msra.mxu0 %v1438
    %1466 = vmatpush.bf16.msra.mxu0 %v1436
    %1467 = vmatpush.bf16.msra.mxu0 %v1434
    %1468 = vmatpush.bf16.msra.mxu0 %v1432
    %1469 = vmatpush.bf16.msra.mxu0 %v1430
    %1470 = vmatmul.bf16.gmra.mxu0 %v1365
    %v1471 = vpop.f32.mrf.mxu0
    %v1472 = vadd.f32 0.0, %v1471
    %v1473 = vpop.f32.mrf.mxu0
    %1474 = vdwg.mxu0
    %1475 = vmatpush.bf16.msra.mxu0 %v1445
    %1476 = vmatpush.bf16.msra.mxu0 %v1443
    %1477 = vmatpush.bf16.msra.mxu0 %v1441
    %1478 = vmatpush.bf16.msra.mxu0 %v1439
    %1479 = vmatpush.bf16.msra.mxu0 %v1437
    %1480 = vmatpush.bf16.msra.mxu0 %v1435
    %1481 = vmatpush.bf16.msra.mxu0 %v1433
    %1482 = vmatpush.bf16.msra.mxu0 %v1431
    %1483 = vmatmul.bf16.gmra.mxu0 %v1365
    %v1484 = vpop.f32.mrf.mxu0
    %v1485 = vadd.f32 0.0, %v1484
    %v1486 = vpop.f32.mrf.mxu0
    %1487 = vdwg.mxu0
    %v1496 = vunpack.c.l.b16 %v1357
    %v1497 = vunpack.c.h.b16 %v1357
    %v1498 = vunpack.c.l.b16 %v1358
    %v1499 = vunpack.c.h.b16 %v1358
    %v1500 = vunpack.c.l.b16 %v1359
    %v1501 = vunpack.c.h.b16 %v1359
    %v1502 = vunpack.c.l.b16 %v1360
    %v1503 = vunpack.c.h.b16 %v1360
    %v1504 = vunpack.c.l.b16 %v1361
    %v1505 = vunpack.c.h.b16 %v1361
    %v1506 = vunpack.c.l.b16 %v1362
    %v1507 = vunpack.c.h.b16 %v1362
    %v1508 = vunpack.c.l.b16 %v1363
    %v1509 = vunpack.c.h.b16 %v1363
    %v1510 = vunpack.c.l.b16 %v1364
    %v1511 = vunpack.c.h.b16 %v1364
    %v1512 = vpack.c.b16 %v1498, %v1496
    %v1513 = vpack.c.b16 %v1499, %v1497
    %v1514 = vpack.c.b16 %v1502, %v1500
    %v1515 = vpack.c.b16 %v1503, %v1501
    %v1516 = vpack.c.b16 %v1506, %v1504
    %v1517 = vpack.c.b16 %v1507, %v1505
    %v1518 = vpack.c.b16 %v1510, %v1508
    %v1519 = vpack.c.b16 %v1511, %v1509
    %v1529 = vsel %vm220, %v1356, 0
    %1531 = vmatpush.bf16.msra.mxu0 0
    %1532 = vmatpush.bf16.msra.mxu0 0
    %1533 = vmatpush.bf16.msra.mxu0 0
    %1534 = vmatpush.bf16.msra.mxu0 0
    %1535 = vmatpush.bf16.msra.mxu0 %v1518
    %1536 = vmatpush.bf16.msra.mxu0 %v1516
    %1537 = vmatpush.bf16.msra.mxu0 %v1514
    %1538 = vmatpush.bf16.msra.mxu0 %v1512
    %1539 = vmatmul.bf16.gmra.mxu0 %v1529
    %v1540 = vpop.f32.mrf.mxu0
    %v1541 = vadd.f32 %v1472, %v1540
    %v1542 = vpop.f32.mrf.mxu0
    %1543 = vdwg.mxu0
    %1544 = vmatpush.bf16.msra.mxu0 0
    %1545 = vmatpush.bf16.msra.mxu0 0
    %1546 = vmatpush.bf16.msra.mxu0 0
    %1547 = vmatpush.bf16.msra.mxu0 0
    %1548 = vmatpush.bf16.msra.mxu0 %v1519
    %1549 = vmatpush.bf16.msra.mxu0 %v1517
    %1550 = vmatpush.bf16.msra.mxu0 %v1515
    %1551 = vmatpush.bf16.msra.mxu0 %v1513
    %1552 = vmatmul.bf16.gmra.mxu0 %v1529
    %v1553 = vpop.f32.mrf.mxu0
    %v1554 = vadd.f32 %v1485, %v1553
    %v1555 = vpop.f32.mrf.mxu0
    %1556 = vdwg.mxu0
    %v1557 = vld [vmem:[%s4] sm:$0xff]
    %v1558 = vld [vmem:[%s4 + $0x8] sm:$0xff]
    %v1559 = vadd.f32 %v1541, %v1557
    %v1560 = vadd.f32 %v1554, %v1558
    %1561 = vmax.xlane.f32.xlu0 %v1559
    %v1562 = vpop.xlane.xlu0 %1561
    %v1563 = vsub.f32 %v1559, %v1562
    %v1564 = vmul.f32 %v1563, 1.442695
    %v1565 = vpow.pop %v1564
    %1566 = vadd.xlane.f32.xlu0 %v1565
    %v1567 = vpop.xlane.xlu0 %1566
    %v1568 = vlog2.pop %v1567
    %v1569 = vmul.f32 %v1568, 0.6931472
    %v1570 = vsub.f32 %v1563, %v1569
    %s1571 = scalar_lea.vmem [#allocation5], 48
    %1572 = vst [vmem:[%s1571] sm:$0xff] %v1570
    %s1573 = scalar_lea.vmem %s0, 28
    %v1574 = vld [vmem:[%s1573] sm:$0xf]
    %v1575 = vld [vmem:[%s2] sm:$0xff]
    %v1576 = vld [vmem:[%s2 + $0x8] sm:$0xff]
    %v1577 = vld [vmem:[%s2 + $0x10] sm:$0xff]
    %v1578 = vld [vmem:[%s2 + $0x18] sm:$0xff]
    %v1579 = vld [vmem:[%s2 + $0x20] sm:$0xff]
    %v1580 = vld [vmem:[%s2 + $0x28] sm:$0xff]
    %v1581 = vld [vmem:[%s2 + $0x30] sm:$0xff]
    %v1582 = vld [vmem:[%s2 + $0x38] sm:$0xff]
    %v1583 = vpack.c.bf16 %v1560, %v1560
    %v1584 = vld [vmem:[#allocation2] sm:$0xff]
    %v1585 = vld [vmem:[#allocation2 + $0x8] sm:$0xff]
    %v1586 = vld [vmem:[#allocation2 + $0x10] sm:$0xff]
    %v1587 = vld [vmem:[#allocation2 + $0x18] sm:$0xff]
    %v1588 = vld [vmem:[#allocation2 + $0x20] sm:$0xff]
    %v1589 = vld [vmem:[#allocation2 + $0x28] sm:$0xff]
    %v1590 = vld [vmem:[#allocation2 + $0x30] sm:$0xff]
    %v1591 = vld [vmem:[#allocation2 + $0x38] sm:$0xff]
    %v1592 = vld [vmem:[#allocation2 + $0x40] sm:$0xff]
    %v1593 = vld [vmem:[#allocation2 + $0x48] sm:$0xff]
    %v1594 = vld [vmem:[#allocation2 + $0x50] sm:$0xff]
    %v1595 = vld [vmem:[#allocation2 + $0x58] sm:$0xff]
    %v1596 = vld [vmem:[#allocation2 + $0x60] sm:$0xff]
    %v1597 = vld [vmem:[#allocation2 + $0x68] sm:$0xff]
    %v1598 = vld [vmem:[#allocation2 + $0x70] sm:$0xff]
    %v1599 = vld [vmem:[#allocation2 + $0x78] sm:$0xff]
    %v1616 = vunpack.c.l.b16 %v1584
    %v1617 = vunpack.c.h.b16 %v1584
    %v1618 = vunpack.c.l.b16 %v1585
    %v1619 = vunpack.c.h.b16 %v1585
    %v1620 = vunpack.c.l.b16 %v1586
    %v1621 = vunpack.c.h.b16 %v1586
    %v1622 = vunpack.c.l.b16 %v1587
    %v1623 = vunpack.c.h.b16 %v1587
    %v1624 = vunpack.c.l.b16 %v1588
    %v1625 = vunpack.c.h.b16 %v1588
    %v1626 = vunpack.c.l.b16 %v1589
    %v1627 = vunpack.c.h.b16 %v1589
    %v1628 = vunpack.c.l.b16 %v1590
    %v1629 = vunpack.c.h.b16 %v1590
    %v1630 = vunpack.c.l.b16 %v1591
    %v1631 = vunpack.c.h.b16 %v1591
    %v1632 = vunpack.c.l.b16 %v1592
    %v1633 = vunpack.c.h.b16 %v1592
    %v1634 = vunpack.c.l.b16 %v1593
    %v1635 = vunpack.c.h.b16 %v1593
    %v1636 = vunpack.c.l.b16 %v1594
    %v1637 = vunpack.c.h.b16 %v1594
    %v1638 = vunpack.c.l.b16 %v1595
    %v1639 = vunpack.c.h.b16 %v1595
    %v1640 = vunpack.c.l.b16 %v1596
    %v1641 = vunpack.c.h.b16 %v1596
    %v1642 = vunpack.c.l.b16 %v1597
    %v1643 = vunpack.c.h.b16 %v1597
    %v1644 = vunpack.c.l.b16 %v1598
    %v1645 = vunpack.c.h.b16 %v1598
    %v1646 = vunpack.c.l.b16 %v1599
    %v1647 = vunpack.c.h.b16 %v1599
    %v1648 = vpack.c.b16 %v1618, %v1616
    %v1649 = vpack.c.b16 %v1619, %v1617
    %v1650 = vpack.c.b16 %v1622, %v1620
    %v1651 = vpack.c.b16 %v1623, %v1621
    %v1652 = vpack.c.b16 %v1626, %v1624
    %v1653 = vpack.c.b16 %v1627, %v1625
    %v1654 = vpack.c.b16 %v1630, %v1628
    %v1655 = vpack.c.b16 %v1631, %v1629
    %v1656 = vpack.c.b16 %v1634, %v1632
    %v1657 = vpack.c.b16 %v1635, %v1633
    %v1658 = vpack.c.b16 %v1638, %v1636
    %v1659 = vpack.c.b16 %v1639, %v1637
    %v1660 = vpack.c.b16 %v1642, %v1640
    %v1661 = vpack.c.b16 %v1643, %v1641
    %v1662 = vpack.c.b16 %v1646, %v1644
    %v1663 = vpack.c.b16 %v1647, %v1645
    %1680 = vmatpush.bf16.msra.mxu0 %v1662
    %1681 = vmatpush.bf16.msra.mxu0 %v1660
    %1682 = vmatpush.bf16.msra.mxu0 %v1658
    %1683 = vmatpush.bf16.msra.mxu0 %v1656
    %1684 = vmatpush.bf16.msra.mxu0 %v1654
    %1685 = vmatpush.bf16.msra.mxu0 %v1652
    %1686 = vmatpush.bf16.msra.mxu0 %v1650
    %1687 = vmatpush.bf16.msra.mxu0 %v1648
    %1688 = vmatmul.bf16.gmra.mxu0 %v1583
    %v1689 = vpop.f32.mrf.mxu0
    %v1690 = vadd.f32 0.0, %v1689
    %v1691 = vpop.f32.mrf.mxu0
    %1692 = vdwg.mxu0
    %1693 = vmatpush.bf16.msra.mxu0 %v1663
    %1694 = vmatpush.bf16.msra.mxu0 %v1661
    %1695 = vmatpush.bf16.msra.mxu0 %v1659
    %1696 = vmatpush.bf16.msra.mxu0 %v1657
    %1697 = vmatpush.bf16.msra.mxu0 %v1655
    %1698 = vmatpush.bf16.msra.mxu0 %v1653
    %1699 = vmatpush.bf16.msra.mxu0 %v1651
    %1700 = vmatpush.bf16.msra.mxu0 %v1649
    %1701 = vmatmul.bf16.gmra.mxu0 %v1583
    %v1702 = vpop.f32.mrf.mxu0
    %v1703 = vadd.f32 0.0, %v1702
    %v1704 = vpop.f32.mrf.mxu0
    %1705 = vdwg.mxu0
    %v1714 = vunpack.c.l.b16 %v1575
    %v1715 = vunpack.c.h.b16 %v1575
    %v1716 = vunpack.c.l.b16 %v1576
    %v1717 = vunpack.c.h.b16 %v1576
    %v1718 = vunpack.c.l.b16 %v1577
    %v1719 = vunpack.c.h.b16 %v1577
    %v1720 = vunpack.c.l.b16 %v1578
    %v1721 = vunpack.c.h.b16 %v1578
    %v1722 = vunpack.c.l.b16 %v1579
    %v1723 = vunpack.c.h.b16 %v1579
    %v1724 = vunpack.c.l.b16 %v1580
    %v1725 = vunpack.c.h.b16 %v1580
    %v1726 = vunpack.c.l.b16 %v1581
    %v1727 = vunpack.c.h.b16 %v1581
    %v1728 = vunpack.c.l.b16 %v1582
    %v1729 = vunpack.c.h.b16 %v1582
    %v1730 = vpack.c.b16 %v1716, %v1714
    %v1731 = vpack.c.b16 %v1717, %v1715
    %v1732 = vpack.c.b16 %v1720, %v1718
    %v1733 = vpack.c.b16 %v1721, %v1719
    %v1734 = vpack.c.b16 %v1724, %v1722
    %v1735 = vpack.c.b16 %v1725, %v1723
    %v1736 = vpack.c.b16 %v1728, %v1726
    %v1737 = vpack.c.b16 %v1729, %v1727
    %v1747 = vsel %vm220, %v1574, 0
    %1749 = vmatpush.bf16.msra.mxu0 0
    %1750 = vmatpush.bf16.msra.mxu0 0
    %1751 = vmatpush.bf16.msra.mxu0 0
    %1752 = vmatpush.bf16.msra.mxu0 0
    %1753 = vmatpush.bf16.msra.mxu0 %v1736
    %1754 = vmatpush.bf16.msra.mxu0 %v1734
    %1755 = vmatpush.bf16.msra.mxu0 %v1732
    %1756 = vmatpush.bf16.msra.mxu0 %v1730
    %1757 = vmatmul.bf16.gmra.mxu0 %v1747
    %v1758 = vpop.f32.mrf.mxu0
    %v1759 = vadd.f32 %v1690, %v1758
    %v1760 = vpop.f32.mrf.mxu0
    %1761 = vdwg.mxu0
    %1762 = vmatpush.bf16.msra.mxu0 0
    %1763 = vmatpush.bf16.msra.mxu0 0
    %1764 = vmatpush.bf16.msra.mxu0 0
    %1765 = vmatpush.bf16.msra.mxu0 0
    %1766 = vmatpush.bf16.msra.mxu0 %v1737
    %1767 = vmatpush.bf16.msra.mxu0 %v1735
    %1768 = vmatpush.bf16.msra.mxu0 %v1733
    %1769 = vmatpush.bf16.msra.mxu0 %v1731
    %1770 = vmatmul.bf16.gmra.mxu0 %v1747
    %v1771 = vpop.f32.mrf.mxu0
    %v1772 = vadd.f32 %v1703, %v1771
    %v1773 = vpop.f32.mrf.mxu0
    %1774 = vdwg.mxu0
    %v1775 = vld [vmem:[%s4] sm:$0xff]
    %v1776 = vld [vmem:[%s4 + $0x8] sm:$0xff]
    %v1777 = vadd.f32 %v1759, %v1775
    %v1778 = vadd.f32 %v1772, %v1776
    %1779 = vmax.xlane.f32.xlu0 %v1777
    %v1780 = vpop.xlane.xlu0 %1779
    %v1781 = vsub.f32 %v1777, %v1780
    %v1782 = vmul.f32 %v1781, 1.442695
    %v1783 = vpow.pop %v1782
    %1784 = vadd.xlane.f32.xlu0 %v1783
    %v1785 = vpop.xlane.xlu0 %1784
    %v1786 = vlog2.pop %v1785
    %v1787 = vmul.f32 %v1786, 0.6931472
    %v1788 = vsub.f32 %v1781, %v1787
    %s1789 = scalar_lea.vmem [#allocation5], 56
    %1790 = vst [vmem:[%s1789] sm:$0xff] %v1788
    %1791 = vst [vmem:[#allocation6] sm:$0xff] %v1778
    // Predicated region
    $region30: #{rnn_sequence_forward.1} parent=1 // pred_check
      _
    $region31: #{rnn_sequence_forward.1} parent=1 // pred_check_branch
      %1793 = sbr.rel (0) target = $region33
    $region32: #{rnn_sequence_forward.1} parent=1 // pred_region
      %1795 = vsyncadd [#allocation4], 0
      %s1796 = sshll.u32 [#allocation5], 4
      %s1797 = int_to_ptr.vmem [resolvable:$true] %s1796
      %s1798 = sshll.u32 %s5, 4
      %s1799 = int_to_ptr.hbm [resolvable:$true] %s1798
      %1804 = dma.vmem_to_hbm [thread:$0]  %s1797, 1024, %s1799, [#allocation4], 128, 128, 8
    $region33: #{rnn_sequence_forward.1} parent=1 // pred_fallthru
      _
    // Predicated region
    $region34: #{rnn_sequence_forward.1} parent=1 // pred_check
      _
    $region35: #{rnn_sequence_forward.1} parent=1 // pred_check_branch
      %1806 = sbr.rel (0) target = $region37
    $region36: #{rnn_sequence_forward.1} parent=1 // pred_region
      %1808 = vsyncadd [#allocation7], 0
      %s1810 = sshll.u32 [#allocation6], 4
      %s1811 = int_to_ptr.vmem [resolvable:$true] %s1810
      %s1812 = sshll.u32 %s6, 4
      %s1813 = int_to_ptr.hbm [resolvable:$true] %s1812
      %1815 = dma.vmem_to_hbm [thread:$0]  %s1811, 128, %s1813, [#allocation7]
    $region37: #{rnn_sequence_forward.1} parent=1 // pred_fallthru
      _
    // Predicated region
    $region38: #{rnn_sequence_forward.1} parent=1 // pred_check
      _
    $region39: #{rnn_sequence_forward.1} parent=1 // pred_check_branch
      %1817 = sbr.rel (0) target = $region41
    $region40: #{rnn_sequence_forward.1} parent=1 // pred_region
      %1819 = dma.done [#allocation4], 1024
    $region41: #{rnn_sequence_forward.1} parent=1 // pred_fallthru
      _
    // Predicated region
    $region42: #{rnn_sequence_forward.1} parent=1 // pred_check
      _
    $region43: #{rnn_sequence_forward.1} parent=1 // pred_check_branch
      %1821 = sbr.rel (0) target = $region45
    $region44: #{rnn_sequence_forward.1} parent=1 // pred_region
      %1823 = dma.done [#allocation7], 128
    $region45: #{rnn_sequence_forward.1} parent=1 // pred_fallthru
      _
    %1824 = vsyncpa [#allocation3], 1
    %1825 = vsyncpa [#allocation4], 1
    %1826 = vsyncpa [#allocation7], 1

</llo_original>
